<compile_context>
chip_gen: v7x
topology: tpu7x:2x2x1
jax: 0.10.0
libtpu: 0.0.40
codegen_flags: <defaults>
</compile_context>

<pallas_src>
from functools import partial

import jax
import jax.numpy as jnp
from jax import lax
from jax.experimental import pallas as pl
from jax.experimental.pallas import tpu as pltpu


def mha_kernel(bias_ref, qf_ref, kvf_ref,
               wq_ref, bq_ref, wk_ref, bk_ref, wv_ref, bv_ref,
               wp_ref, bp_ref,
               out_ref,
               k_scratch, v_scratch, attn_scratch,
               *, num_heads, head_dim, compute_dtype):
    """One grid step = (batch block, q tile)."""
    Bb, Tq, E = qf_ref.shape
    _, Sk, _ = kvf_ref.shape
    D = head_dim
    scale = 1.0 / (float(D) ** 0.5)
    f32 = jnp.float32
    exact = (compute_dtype == jnp.float32)

    # ---- K/V projection: once per batch block. The q-tile axis is 'arbitrary'
    #      so these VMEM scratches persist across all q tiles of this block. ----
    @pl.when(pl.program_id(1) == 0)
    def _project_kv():
        kvf = kvf_ref[...].reshape(Bb * Sk, E)                 # row-packed rows
        k = jnp.dot(kvf, wk_ref[...], preferred_element_type=f32) + bk_ref[...]
        v = jnp.dot(kvf, wv_ref[...], preferred_element_type=f32) + bv_ref[...]
        k_scratch[...] = k.reshape(Bb, Sk, E).astype(k_scratch.dtype)
        v_scratch[...] = v.reshape(Bb, Sk, E).astype(v_scratch.dtype)

    # ---- Q projection for this q tile, row-packed across the batch block. ----
    qf = qf_ref[...].reshape(Bb * Tq, E)
    q = jnp.dot(qf, wq_ref[...], preferred_element_type=f32) + bq_ref[...]
    q3 = q.astype(compute_dtype).reshape(Bb, Tq, E)

    bias = bias_ref[...].astype(f32)            # (Tq, Sk): 0 keep / -10000 masked

    # ---- Per-head attention. Head outputs land in a (Bb*Tq, E) VMEM scratch so
    #      the output projection runs once with contraction K = E. ----
    # TODO(synk): switch to lax.fori_loop(..., unroll=True) over heads when
    #             num_heads > ~8 to bound vreg live ranges.
    # TODO(synk): for head_dim < 128, a heads-as-batch dot_general (single
    #             relayout) would also remove the per-head lane slices below.
    for h in range(num_heads):
        sl = slice(h * D, (h + 1) * D)
        qh = q3[:, :, sl]                        # (Bb, Tq, D) compute_dtype
        kh = k_scratch[:, :, sl]                 # (Bb, Sk, D) compute_dtype
        vh = v_scratch[:, :, sl]                 # (Bb, Sk, D) compute_dtype

        # Contract the shared last dim directly -> no kh.T (XLU transpose).
        s = lax.dot_general(
            qh, kh, dimension_numbers=(((2,), (2,)), ((0,), (0,))),
            preferred_element_type=f32) * scale                 # (Bb, Tq, Sk)
        s = s + bias[None, :, :]                 # additive mask bias
        s = s - jnp.max(s, axis=-1, keepdims=True)
        e = jnp.exp(s)                                          # f32 on the EUP
        # EUP reciprocal of the softmax denominator (approx on the bf16 perf
        # path; exact on the f32 parity path), folded into PV as a multiply.
        inv = pl.reciprocal(jnp.sum(e, axis=-1, keepdims=True), approx=not exact)

        head_out = lax.dot_general(
            e.astype(compute_dtype), vh,
            dimension_numbers=(((2,), (1,)), ((0,), (0,))),
            preferred_element_type=f32) * inv                   # (Bb, Tq, D)

        attn_scratch[:, sl] = head_out.reshape(Bb * Tq, D).astype(attn_scratch.dtype)

    # Single output projection, contraction K = E.
    proj = jnp.dot(attn_scratch[...], wp_ref[...], preferred_element_type=f32) + bp_ref[...]
    out_ref[...] = proj.reshape(out_ref.shape).astype(out_ref.dtype)


def transformer_mha(q_features, kv_features, mask, params, num_heads, *,
                    block_b=None, block_q=None,
                    compute_dtype=jnp.bfloat16,
                    vmem_limit_bytes=48 * 1024 * 1024):
    B, Sq, E = q_features.shape
    Bk, Sk, Ek = kv_features.shape
    assert Bk == B and Ek == E
    head_dim = E // num_heads
    assert head_dim * num_heads == E

    # --- tiling: target ~256-row MXU passes (v6e/v7x 2x256x256 MXUs; v5e's
    #     128x128 MXU is fine with smaller M too). ---
    if block_q is None:
        cands = [d for d in range(1, min(Sq, 256) + 1)
                 if Sq % d == 0 and (d % 8 == 0 or d == Sq)]
        block_q = max(cands) if cands else Sq
    assert Sq % block_q == 0, "block_q must divide Sq"
    if block_b is None:
        target = max(1, 256 // block_q)
        block_b = max(d for d in range(1, B + 1) if B % d == 0 and d <= target)
    assert B % block_b == 0, "block_b must divide B"
    grid = (B // block_b, Sq // block_q)

    # --- parameter prep: pre-transposed to (in, out); wkv split into wk/wv so
    #     there are no lane-misaligned :E / E: slices inside the kernel. ---
    cd = compute_dtype
    wq_t = jnp.asarray(params["wq"]).T.astype(cd)             # (E, E)
    wk_t = jnp.asarray(params["wkv"])[:E].T.astype(cd)        # (E, E)
    wv_t = jnp.asarray(params["wkv"])[E:].T.astype(cd)        # (E, E)
    wp_t = jnp.asarray(params["wp"]).T.astype(cd)             # (E, E)
    bq = jnp.asarray(params["bq"]).reshape(1, E).astype(jnp.float32)
    bk = jnp.asarray(params["bkv"])[:E].reshape(1, E).astype(jnp.float32)
    bv = jnp.asarray(params["bkv"])[E:].reshape(1, E).astype(jnp.float32)
    bp = jnp.asarray(params["bp"]).reshape(1, E).astype(jnp.float32)

    # --- mask -> additive bias (0 keep / -10000 drop); bf16 halves its DMA.
    #     NOTE: additive bias (not hard where-assignment) -- identical softmax
    #     result whenever each row has >= 1 valid key (true for causal masks). ---
    mask_arr = jnp.asarray(mask)
    assert mask_arr.shape[-2:] == (Sq, Sk), "mask must end in (Sq, Sk)"
    lead = 1
    for d in mask_arr.shape[:-2]:
        lead *= d
    assert lead == 1, "kernel broadcasts a single (Sq, Sk) mask over batch & heads"
    bias2d = jnp.where(mask_arr.reshape(Sq, Sk) != 0, 0.0, -10000.0).astype(jnp.bfloat16)

    q_in = q_features.astype(cd)
    kv_in = kv_features.astype(cd)

    kernel = partial(mha_kernel, num_heads=num_heads, head_dim=head_dim,
                     compute_dtype=cd)

    # Constant-index weight/bias blocks: single-buffered (no wasted 2nd copy).
    def const(shape):
        return pl.BlockSpec(shape, lambda bi, qi: (0, 0),
                            pipeline_mode=pl.Buffered(1))

    out = pl.pallas_call(
        kernel,
        out_shape=jax.ShapeDtypeStruct((B, Sq, E), jnp.float32),
        grid_spec=pltpu.PrefetchScalarGridSpec(
            num_scalar_prefetch=0,
            grid=grid,
            in_specs=[
                pl.BlockSpec((block_q, Sk), lambda bi, qi: (qi, 0)),              # mask bias
                pl.BlockSpec((block_b, block_q, E), lambda bi, qi: (bi, qi, 0)),  # q_features
                pl.BlockSpec((block_b, Sk, E), lambda bi, qi: (bi, 0, 0)),        # kv_features
                const((E, E)), const((1, E)),                                     # Wq^T, bq
                const((E, E)), const((1, E)),                                     # Wk^T, bk
                const((E, E)), const((1, E)),                                     # Wv^T, bv
                const((E, E)), const((1, E)),                                     # Wp^T, bp
            ],
            out_specs=pl.BlockSpec((block_b, block_q, E), lambda bi, qi: (bi, qi, 0)),
            scratch_shapes=[
                pltpu.VMEM((block_b, Sk, E), cd),              # projected K cache
                pltpu.VMEM((block_b, Sk, E), cd),              # projected V cache
                pltpu.VMEM((block_b * block_q, E), cd),        # merged head outputs
            ]),
        compiler_params=pltpu.CompilerParams(
            # Batch axis parallel (megacore sharding); q-tile axis arbitrary so
            # the projected-K/V scratch is reused across q tiles of a block.
            dimension_semantics=("parallel", "arbitrary"),
            # ~48 MiB: above the 16/32 MiB scoped defaults with headroom under
            # v7x's 64 MiB/TC; raise toward ~100 MiB on v6e for bigger tiles.
            vmem_limit_bytes=vmem_limit_bytes),
    )(bias2d, q_in, kv_in, wq_t, bq, wk_t, bk, wv_t, bv, wp_t, bp)
    return out


def reference_mha(q_features, kv_features, mask, params, num_heads):
    """Pure-JAX reference mirroring the PyTorch forward exactly (eval mode)."""
    B, Sq, E = q_features.shape
    _, Sk, _ = kv_features.shape
    D = E // num_heads

    query = q_features @ params["wq"].T + params["bq"]
    kv = kv_features @ params["wkv"].T + params["bkv"]
    key, value = kv[..., :E], kv[..., E:]

    def split_heads(t):
        return t.reshape(B, -1, num_heads, D).transpose(0, 2, 1, 3)

    q = split_heads(query)   # (B, H, Sq, D)
    k = split_heads(key)     # (B, H, Sk, D)
    v = split_heads(value)   # (B, H, Sk, D)

    scores = jnp.einsum("bhqd,bhkd->bhqk", q, k) / (float(D) ** 0.5)
    scores = jnp.where(mask.astype(bool), scores, jnp.float32(-10000.0))
    weights = jax.nn.softmax(scores, axis=-1)
    attn = jnp.einsum("bhqk,bhkd->bhqd", weights, v)
    attn = attn.transpose(0, 2, 1, 3).reshape(B, Sq, E)
    return attn @ params["wp"].T + params["bp"]


if __name__ == "__main__":
    # Config: n_embd=32, n_head=4 -> head_dim=8; batch=2, seq=8.
    B, Sq, Sk = 2, 8, 8
    n_embd, n_head = 32, 4

    key = jax.random.PRNGKey(0)
    ks = jax.random.split(key, 8)

    q_features = jax.random.normal(ks[0], (B, Sq, n_embd), dtype=jnp.float32)
    kv_features = jax.random.normal(ks[1], (B, Sk, n_embd), dtype=jnp.float32)
    # (1, 1, Sq, Sk) causal mask, as in the PyTorch docstring convention.
    mask = jnp.tril(jnp.ones((Sq, Sk), dtype=jnp.int32)).reshape(1, 1, Sq, Sk)

    scale = 0.02
    params = {
        "wq": scale * jax.random.normal(ks[2], (n_embd, n_embd), dtype=jnp.float32),
        "bq": scale * jax.random.normal(ks[3], (n_embd,), dtype=jnp.float32),
        "wkv": scale * jax.random.normal(ks[4], (2 * n_embd, n_embd), dtype=jnp.float32),
        "bkv": scale * jax.random.normal(ks[5], (2 * n_embd,), dtype=jnp.float32),
        "wp": scale * jax.random.normal(ks[6], (n_embd, n_embd), dtype=jnp.float32),
        "bp": scale * jax.random.normal(ks[7], (n_embd,), dtype=jnp.float32),
    }

    ref = reference_mha(q_features, kv_features, mask, params, n_head)

    # Numerics-parity path: f32 matmuls, exact reciprocal.
    out_f32 = transformer_mha(q_features, kv_features, mask, params, n_head,
                              compute_dtype=jnp.float32)
    out_f32 = jax.block_until_ready(out_f32)
    assert out_f32.shape == (B, Sq, n_embd)
    assert jnp.allclose(out_f32, ref, atol=5e-4, rtol=5e-4), "f32 path mismatch vs reference"

    # Default perf path: bf16 MXU inputs, f32 accumulation / softmax.
    out_bf16 = transformer_mha(q_features, kv_features, mask, params, n_head)
    out_bf16 = jax.block_until_ready(out_bf16)
    assert out_bf16.shape == (B, Sq, n_embd)
    assert jnp.allclose(out_bf16, ref, atol=3e-2, rtol=3e-2), "bf16 path mismatch vs reference"

    print("KERNEL_OK")
</pallas_src>

<mosaic_0001>
module attributes {stable_mosaic.version = 11 : i64} {
  func.func @mha_kernel(%arg0: i32, %arg1: i32, %arg2: memref<8x8xbf16, #tpu.memory_space<vmem>>, %arg3: memref<2x8x32xf32, #tpu.memory_space<vmem>>, %arg4: memref<2x8x32xf32, #tpu.memory_space<vmem>>, %arg5: memref<32x32xf32, #tpu.memory_space<vmem>>, %arg6: memref<1x32xf32, #tpu.memory_space<vmem>>, %arg7: memref<32x32xf32, #tpu.memory_space<vmem>>, %arg8: memref<1x32xf32, #tpu.memory_space<vmem>>, %arg9: memref<32x32xf32, #tpu.memory_space<vmem>>, %arg10: memref<1x32xf32, #tpu.memory_space<vmem>>, %arg11: memref<32x32xf32, #tpu.memory_space<vmem>>, %arg12: memref<1x32xf32, #tpu.memory_space<vmem>>, %arg13: memref<2x8x32xf32, #tpu.memory_space<vmem>>, %arg14: memref<2x8x32xf32, #tpu.memory_space<vmem>>, %arg15: memref<2x8x32xf32, #tpu.memory_space<vmem>>, %arg16: memref<16x32xf32, #tpu.memory_space<vmem>>) attributes {dimension_semantics = [#tpu.dimension_semantics<parallel>, #tpu.dimension_semantics<arbitrary>], iteration_bounds = array<i64: 1, 1>, scalar_prefetch = 0 : i64, scratch_operands = 3 : i64, tpu.core_type = #tpu.core_type<tc>, window_params = [{transform_indices = @transform_0, window_bounds = array<i64: 8, 8>}, {transform_indices = @transform_1, window_bounds = array<i64: 2, 8, 32>}, {transform_indices = @transform_2, window_bounds = array<i64: 2, 8, 32>}, {pipeline_mode = #tpu.pipeline_mode<synchronous>, transform_indices = @transform_3, window_bounds = array<i64: 32, 32>}, {pipeline_mode = #tpu.pipeline_mode<synchronous>, transform_indices = @transform_4, window_bounds = array<i64: 1, 32>}, {pipeline_mode = #tpu.pipeline_mode<synchronous>, transform_indices = @transform_5, window_bounds = array<i64: 32, 32>}, {pipeline_mode = #tpu.pipeline_mode<synchronous>, transform_indices = @transform_6, window_bounds = array<i64: 1, 32>}, {pipeline_mode = #tpu.pipeline_mode<synchronous>, transform_indices = @transform_7, window_bounds = array<i64: 32, 32>}, {pipeline_mode = #tpu.pipeline_mode<synchronous>, transform_indices = @transform_8, window_bounds = array<i64: 1, 32>}, {pipeline_mode = #tpu.pipeline_mode<synchronous>, transform_indices = @transform_9, window_bounds = array<i64: 32, 32>}, {pipeline_mode = #tpu.pipeline_mode<synchronous>, transform_indices = @transform_10, window_bounds = array<i64: 1, 32>}, {transform_indices = @transform_11, window_bounds = array<i64: 2, 8, 32>}]} {
    %c0_i32 = arith.constant 0 : i32
    %0 = arith.cmpi eq, %arg1, %c0_i32 : i32
    %1 = arith.extui %0 : i1 to i32
    %c0_i32_0 = arith.constant 0 : i32
    %2 = arith.cmpi ne, %1, %c0_i32_0 : i32
    scf.if %2 {
      %c0_68 = arith.constant 0 : index
      %c0_69 = arith.constant 0 : index
      %c0_70 = arith.constant 0 : index
      %109 = vector.load %arg4[%c0_68, %c0_69, %c0_70] : memref<2x8x32xf32, #tpu.memory_space<vmem>>, vector<2x8x32xf32>
      %110 = vector.shape_cast %109 : vector<2x8x32xf32> to vector<16x32xf32>
      %c0_71 = arith.constant 0 : index
      %c0_72 = arith.constant 0 : index
      %111 = vector.load %arg7[%c0_71, %c0_72] : memref<32x32xf32, #tpu.memory_space<vmem>>, vector<32x32xf32>
      %cst_73 = arith.constant dense<0.000000e+00> : vector<16x32xf32>
      %112 = tpu.matmul %110, %111, %cst_73 {dimension_numbers = #tpu.dot_dimension_numbers<[1], [0], [0], [1], [0, 0, 1, 1], [], []>} : vector<16x32xf32>, vector<32x32xf32>, vector<16x32xf32> -> vector<16x32xf32>
      %c0_74 = arith.constant 0 : index
      %c0_75 = arith.constant 0 : index
      %113 = vector.load %arg8[%c0_74, %c0_75] : memref<1x32xf32, #tpu.memory_space<vmem>>, vector<1x32xf32>
      %114 = vector.broadcast %113 : vector<1x32xf32> to vector<16x32xf32>
      %115 = arith.addf %112, %114 : vector<16x32xf32>
      %c0_76 = arith.constant 0 : index
      %c0_77 = arith.constant 0 : index
      %116 = vector.load %arg9[%c0_76, %c0_77] : memref<32x32xf32, #tpu.memory_space<vmem>>, vector<32x32xf32>
      %cst_78 = arith.constant dense<0.000000e+00> : vector<16x32xf32>
      %117 = tpu.matmul %110, %116, %cst_78 {dimension_numbers = #tpu.dot_dimension_numbers<[1], [0], [0], [1], [0, 0, 1, 1], [], []>} : vector<16x32xf32>, vector<32x32xf32>, vector<16x32xf32> -> vector<16x32xf32>
      %c0_79 = arith.constant 0 : index
      %c0_80 = arith.constant 0 : index
      %118 = vector.load %arg10[%c0_79, %c0_80] : memref<1x32xf32, #tpu.memory_space<vmem>>, vector<1x32xf32>
      %119 = vector.broadcast %118 : vector<1x32xf32> to vector<16x32xf32>
      %120 = arith.addf %117, %119 : vector<16x32xf32>
      %121 = vector.shape_cast %115 : vector<16x32xf32> to vector<2x8x32xf32>
      %c0_81 = arith.constant 0 : index
      %c0_82 = arith.constant 0 : index
      %c0_83 = arith.constant 0 : index
      %122 = vector.load %arg14[%c0_81, %c0_82, %c0_83] : memref<2x8x32xf32, #tpu.memory_space<vmem>>, vector<2x8x32xf32>
      tpu.vector_store %arg14[%c0_81, %c0_82, %c0_83], %121 {strides = array<i32>} : memref<2x8x32xf32, #tpu.memory_space<vmem>>, vector<2x8x32xf32>,
      %123 = vector.shape_cast %120 : vector<16x32xf32> to vector<2x8x32xf32>
      %c0_84 = arith.constant 0 : index
      %c0_85 = arith.constant 0 : index
      %c0_86 = arith.constant 0 : index
      %124 = vector.load %arg15[%c0_84, %c0_85, %c0_86] : memref<2x8x32xf32, #tpu.memory_space<vmem>>, vector<2x8x32xf32>
      tpu.vector_store %arg15[%c0_84, %c0_85, %c0_86], %123 {strides = array<i32>} : memref<2x8x32xf32, #tpu.memory_space<vmem>>, vector<2x8x32xf32>,
    } else {
    }
    %c0 = arith.constant 0 : index
    %c0_1 = arith.constant 0 : index
    %c0_2 = arith.constant 0 : index
    %3 = vector.load %arg3[%c0, %c0_1, %c0_2] : memref<2x8x32xf32, #tpu.memory_space<vmem>>, vector<2x8x32xf32>
    %4 = vector.shape_cast %3 : vector<2x8x32xf32> to vector<16x32xf32>
    %c0_3 = arith.constant 0 : index
    %c0_4 = arith.constant 0 : index
    %5 = vector.load %arg5[%c0_3, %c0_4] : memref<32x32xf32, #tpu.memory_space<vmem>>, vector<32x32xf32>
    %cst = arith.constant dense<0.000000e+00> : vector<16x32xf32>
    %6 = tpu.matmul %4, %5, %cst {dimension_numbers = #tpu.dot_dimension_numbers<[1], [0], [0], [1], [0, 0, 1, 1], [], []>} : vector<16x32xf32>, vector<32x32xf32>, vector<16x32xf32> -> vector<16x32xf32>
    %c0_5 = arith.constant 0 : index
    %c0_6 = arith.constant 0 : index
    %7 = vector.load %arg6[%c0_5, %c0_6] : memref<1x32xf32, #tpu.memory_space<vmem>>, vector<1x32xf32>
    %8 = vector.broadcast %7 : vector<1x32xf32> to vector<16x32xf32>
    %9 = arith.addf %6, %8 : vector<16x32xf32>
    %10 = vector.shape_cast %9 : vector<16x32xf32> to vector<2x8x32xf32>
    %c0_7 = arith.constant 0 : index
    %c0_8 = arith.constant 0 : index
    %11 = vector.load %arg2[%c0_7, %c0_8] : memref<8x8xbf16, #tpu.memory_space<vmem>>, vector<8x8xbf16>
    %12 = arith.extf %11 : vector<8x8xbf16> to vector<8x8xf32>
    %13 = vector.extract_strided_slice %10 {offsets = [0, 0, 0], sizes = [2, 8, 8], strides = [1, 1, 1]} : vector<2x8x32xf32> to vector<2x8x8xf32>
    %c0_9 = arith.constant 0 : index
    %c0_10 = arith.constant 0 : index
    %c0_11 = arith.constant 0 : index
    %14 = vector.load %arg14[%c0_9, %c0_10, %c0_11] : memref<2x8x32xf32, #tpu.memory_space<vmem>>, vector<2x8x8xf32>
    %c0_12 = arith.constant 0 : index
    %c0_13 = arith.constant 0 : index
    %c0_14 = arith.constant 0 : index
    %15 = vector.load %arg15[%c0_12, %c0_13, %c0_14] : memref<2x8x32xf32, #tpu.memory_space<vmem>>, vector<2x8x8xf32>
    %cst_15 = arith.constant dense<0.000000e+00> : vector<2x8x8xf32>
    %16 = tpu.matmul %13, %14, %cst_15 {dimension_numbers = #tpu.dot_dimension_numbers<[2], [2], [1], [1], [0, 0, 0, 1, 1, 1], [0], [0]>} : vector<2x8x8xf32>, vector<2x8x8xf32>, vector<2x8x8xf32> -> vector<2x8x8xf32>
    %cst_16 = arith.constant 0.353553385 : f32
    %17 = vector.broadcast %cst_16 : f32 to vector<2x8x8xf32>
    %18 = arith.mulf %16, %17 : vector<2x8x8xf32>
    %19 = vector.shape_cast %12 : vector<8x8xf32> to vector<1x8x8xf32>
    %20 = vector.broadcast %19 : vector<1x8x8xf32> to vector<2x8x8xf32>
    %21 = arith.addf %18, %20 : vector<2x8x8xf32>
    %cst_17 = arith.constant dense<0xFF800000> : vector<2x8xf32>
    %22 = vector.multi_reduction <maximumf>, %21, %cst_17 [2] : vector<2x8x8xf32> to vector<2x8xf32>
    %23 = vector.shape_cast %22 : vector<2x8xf32> to vector<2x8x1xf32>
    %24 = vector.broadcast %23 : vector<2x8x1xf32> to vector<2x8x8xf32>
    %25 = arith.subf %21, %24 : vector<2x8x8xf32>
    %26 = math.exp %25 : vector<2x8x8xf32>
    %cst_18 = arith.constant dense<0.000000e+00> : vector<2x8xf32>
    %27 = vector.multi_reduction <add>, %26, %cst_18 [2] : vector<2x8x8xf32> to vector<2x8xf32>
    %28 = vector.shape_cast %27 : vector<2x8xf32> to vector<2x8x1xf32>
    %29 = tpu.reciprocal %28 : vector<2x8x1xf32> -> vector<2x8x1xf32>
    %cst_19 = arith.constant dense<0.000000e+00> : vector<2x8x8xf32>
    %30 = tpu.matmul %26, %15, %cst_19 {dimension_numbers = #tpu.dot_dimension_numbers<[2], [1], [1], [2], [0, 0, 0, 1, 1, 2], [0], [0]>} : vector<2x8x8xf32>, vector<2x8x8xf32>, vector<2x8x8xf32> -> vector<2x8x8xf32>
    %31 = vector.broadcast %29 : vector<2x8x1xf32> to vector<2x8x8xf32>
    %32 = arith.mulf %30, %31 : vector<2x8x8xf32>
    %33 = vector.shape_cast %32 : vector<2x8x8xf32> to vector<16x8xf32>
    %c0_20 = arith.constant 0 : index
    %c0_21 = arith.constant 0 : index
    %34 = vector.load %arg16[%c0_20, %c0_21] : memref<16x32xf32, #tpu.memory_space<vmem>>, vector<16x8xf32>
    tpu.vector_store %arg16[%c0_20, %c0_21], %33 {strides = array<i32>} : memref<16x32xf32, #tpu.memory_space<vmem>>, vector<16x8xf32>,
    %35 = vector.extract_strided_slice %10 {offsets = [0, 0, 8], sizes = [2, 8, 8], strides = [1, 1, 1]} : vector<2x8x32xf32> to vector<2x8x8xf32>
    %c0_22 = arith.constant 0 : index
    %c0_23 = arith.constant 0 : index
    %c8 = arith.constant 8 : index
    %36 = vector.load %arg14[%c0_22, %c0_23, %c8] : memref<2x8x32xf32, #tpu.memory_space<vmem>>, vector<2x8x8xf32>
    %c0_24 = arith.constant 0 : index
    %c0_25 = arith.constant 0 : index
    %c8_26 = arith.constant 8 : index
    %37 = vector.load %arg15[%c0_24, %c0_25, %c8_26] : memref<2x8x32xf32, #tpu.memory_space<vmem>>, vector<2x8x8xf32>
    %cst_27 = arith.constant dense<0.000000e+00> : vector<2x8x8xf32>
    %38 = tpu.matmul %35, %36, %cst_27 {dimension_numbers = #tpu.dot_dimension_numbers<[2], [2], [1], [1], [0, 0, 0, 1, 1, 1], [0], [0]>} : vector<2x8x8xf32>, vector<2x8x8xf32>, vector<2x8x8xf32> -> vector<2x8x8xf32>
    %cst_28 = arith.constant 0.353553385 : f32
    %39 = vector.broadcast %cst_28 : f32 to vector<2x8x8xf32>
    %40 = arith.mulf %38, %39 : vector<2x8x8xf32>
    %41 = vector.shape_cast %12 : vector<8x8xf32> to vector<1x8x8xf32>
    %42 = vector.broadcast %41 : vector<1x8x8xf32> to vector<2x8x8xf32>
    %43 = arith.addf %40, %42 : vector<2x8x8xf32>
    %cst_29 = arith.constant dense<0xFF800000> : vector<2x8xf32>
    %44 = vector.multi_reduction <maximumf>, %43, %cst_29 [2] : vector<2x8x8xf32> to vector<2x8xf32>
    %45 = vector.shape_cast %44 : vector<2x8xf32> to vector<2x8x1xf32>
    %46 = vector.broadcast %45 : vector<2x8x1xf32> to vector<2x8x8xf32>
    %47 = arith.subf %43, %46 : vector<2x8x8xf32>
    %48 = math.exp %47 : vector<2x8x8xf32>
    %cst_30 = arith.constant dense<0.000000e+00> : vector<2x8xf32>
    %49 = vector.multi_reduction <add>, %48, %cst_30 [2] : vector<2x8x8xf32> to vector<2x8xf32>
    %50 = vector.shape_cast %49 : vector<2x8xf32> to vector<2x8x1xf32>
    %51 = tpu.reciprocal %50 : vector<2x8x1xf32> -> vector<2x8x1xf32>
    %cst_31 = arith.constant dense<0.000000e+00> : vector<2x8x8xf32>
    %52 = tpu.matmul %48, %37, %cst_31 {dimension_numbers = #tpu.dot_dimension_numbers<[2], [1], [1], [2], [0, 0, 0, 1, 1, 2], [0], [0]>} : vector<2x8x8xf32>, vector<2x8x8xf32>, vector<2x8x8xf32> -> vector<2x8x8xf32>
    %53 = vector.broadcast %51 : vector<2x8x1xf32> to vector<2x8x8xf32>
    %54 = arith.mulf %52, %53 : vector<2x8x8xf32>
    %55 = vector.shape_cast %54 : vector<2x8x8xf32> to vector<16x8xf32>
    %c0_32 = arith.constant 0 : index
    %c8_33 = arith.constant 8 : index
    %56 = vector.load %arg16[%c0_32, %c8_33] : memref<16x32xf32, #tpu.memory_space<vmem>>, vector<16x8xf32>
    tpu.vector_store %arg16[%c0_32, %c8_33], %55 {strides = array<i32>} : memref<16x32xf32, #tpu.memory_space<vmem>>, vector<16x8xf32>,
    %57 = vector.extract_strided_slice %10 {offsets = [0, 0, 16], sizes = [2, 8, 8], strides = [1, 1, 1]} : vector<2x8x32xf32> to vector<2x8x8xf32>
    %c0_34 = arith.constant 0 : index
    %c0_35 = arith.constant 0 : index
    %c16 = arith.constant 16 : index
    %58 = vector.load %arg14[%c0_34, %c0_35, %c16] : memref<2x8x32xf32, #tpu.memory_space<vmem>>, vector<2x8x8xf32>
    %c0_36 = arith.constant 0 : index
    %c0_37 = arith.constant 0 : index
    %c16_38 = arith.constant 16 : index
    %59 = vector.load %arg15[%c0_36, %c0_37, %c16_38] : memref<2x8x32xf32, #tpu.memory_space<vmem>>, vector<2x8x8xf32>
    %cst_39 = arith.constant dense<0.000000e+00> : vector<2x8x8xf32>
    %60 = tpu.matmul %57, %58, %cst_39 {dimension_numbers = #tpu.dot_dimension_numbers<[2], [2], [1], [1], [0, 0, 0, 1, 1, 1], [0], [0]>} : vector<2x8x8xf32>, vector<2x8x8xf32>, vector<2x8x8xf32> -> vector<2x8x8xf32>
    %cst_40 = arith.constant 0.353553385 : f32
    %61 = vector.broadcast %cst_40 : f32 to vector<2x8x8xf32>
    %62 = arith.mulf %60, %61 : vector<2x8x8xf32>
    %63 = vector.shape_cast %12 : vector<8x8xf32> to vector<1x8x8xf32>
    %64 = vector.broadcast %63 : vector<1x8x8xf32> to vector<2x8x8xf32>
    %65 = arith.addf %62, %64 : vector<2x8x8xf32>
    %cst_41 = arith.constant dense<0xFF800000> : vector<2x8xf32>
    %66 = vector.multi_reduction <maximumf>, %65, %cst_41 [2] : vector<2x8x8xf32> to vector<2x8xf32>
    %67 = vector.shape_cast %66 : vector<2x8xf32> to vector<2x8x1xf32>
    %68 = vector.broadcast %67 : vector<2x8x1xf32> to vector<2x8x8xf32>
    %69 = arith.subf %65, %68 : vector<2x8x8xf32>
    %70 = math.exp %69 : vector<2x8x8xf32>
    %cst_42 = arith.constant dense<0.000000e+00> : vector<2x8xf32>
    %71 = vector.multi_reduction <add>, %70, %cst_42 [2] : vector<2x8x8xf32> to vector<2x8xf32>
    %72 = vector.shape_cast %71 : vector<2x8xf32> to vector<2x8x1xf32>
    %73 = tpu.reciprocal %72 : vector<2x8x1xf32> -> vector<2x8x1xf32>
    %cst_43 = arith.constant dense<0.000000e+00> : vector<2x8x8xf32>
    %74 = tpu.matmul %70, %59, %cst_43 {dimension_numbers = #tpu.dot_dimension_numbers<[2], [1], [1], [2], [0, 0, 0, 1, 1, 2], [0], [0]>} : vector<2x8x8xf32>, vector<2x8x8xf32>, vector<2x8x8xf32> -> vector<2x8x8xf32>
    %75 = vector.broadcast %73 : vector<2x8x1xf32> to vector<2x8x8xf32>
    %76 = arith.mulf %74, %75 : vector<2x8x8xf32>
    %77 = vector.shape_cast %76 : vector<2x8x8xf32> to vector<16x8xf32>
    %c0_44 = arith.constant 0 : index
    %c16_45 = arith.constant 16 : index
    %78 = vector.load %arg16[%c0_44, %c16_45] : memref<16x32xf32, #tpu.memory_space<vmem>>, vector<16x8xf32>
    tpu.vector_store %arg16[%c0_44, %c16_45], %77 {strides = array<i32>} : memref<16x32xf32, #tpu.memory_space<vmem>>, vector<16x8xf32>,
    %79 = vector.extract_strided_slice %10 {offsets = [0, 0, 24], sizes = [2, 8, 8], strides = [1, 1, 1]} : vector<2x8x32xf32> to vector<2x8x8xf32>
    %c0_46 = arith.constant 0 : index
    %c0_47 = arith.constant 0 : index
    %c24 = arith.constant 24 : index
    %80 = vector.load %arg14[%c0_46, %c0_47, %c24] : memref<2x8x32xf32, #tpu.memory_space<vmem>>, vector<2x8x8xf32>
    %c0_48 = arith.constant 0 : index
    %c0_49 = arith.constant 0 : index
    %c24_50 = arith.constant 24 : index
    %81 = vector.load %arg15[%c0_48, %c0_49, %c24_50] : memref<2x8x32xf32, #tpu.memory_space<vmem>>, vector<2x8x8xf32>
    %cst_51 = arith.constant dense<0.000000e+00> : vector<2x8x8xf32>
    %82 = tpu.matmul %79, %80, %cst_51 {dimension_numbers = #tpu.dot_dimension_numbers<[2], [2], [1], [1], [0, 0, 0, 1, 1, 1], [0], [0]>} : vector<2x8x8xf32>, vector<2x8x8xf32>, vector<2x8x8xf32> -> vector<2x8x8xf32>
    %cst_52 = arith.constant 0.353553385 : f32
    %83 = vector.broadcast %cst_52 : f32 to vector<2x8x8xf32>
    %84 = arith.mulf %82, %83 : vector<2x8x8xf32>
    %85 = vector.shape_cast %12 : vector<8x8xf32> to vector<1x8x8xf32>
    %86 = vector.broadcast %85 : vector<1x8x8xf32> to vector<2x8x8xf32>
    %87 = arith.addf %84, %86 : vector<2x8x8xf32>
    %cst_53 = arith.constant dense<0xFF800000> : vector<2x8xf32>
    %88 = vector.multi_reduction <maximumf>, %87, %cst_53 [2] : vector<2x8x8xf32> to vector<2x8xf32>
    %89 = vector.shape_cast %88 : vector<2x8xf32> to vector<2x8x1xf32>
    %90 = vector.broadcast %89 : vector<2x8x1xf32> to vector<2x8x8xf32>
    %91 = arith.subf %87, %90 : vector<2x8x8xf32>
    %92 = math.exp %91 : vector<2x8x8xf32>
    %cst_54 = arith.constant dense<0.000000e+00> : vector<2x8xf32>
    %93 = vector.multi_reduction <add>, %92, %cst_54 [2] : vector<2x8x8xf32> to vector<2x8xf32>
    %94 = vector.shape_cast %93 : vector<2x8xf32> to vector<2x8x1xf32>
    %95 = tpu.reciprocal %94 : vector<2x8x1xf32> -> vector<2x8x1xf32>
    %cst_55 = arith.constant dense<0.000000e+00> : vector<2x8x8xf32>
    %96 = tpu.matmul %92, %81, %cst_55 {dimension_numbers = #tpu.dot_dimension_numbers<[2], [1], [1], [2], [0, 0, 0, 1, 1, 2], [0], [0]>} : vector<2x8x8xf32>, vector<2x8x8xf32>, vector<2x8x8xf32> -> vector<2x8x8xf32>
    %97 = vector.broadcast %95 : vector<2x8x1xf32> to vector<2x8x8xf32>
    %98 = arith.mulf %96, %97 : vector<2x8x8xf32>
    %99 = vector.shape_cast %98 : vector<2x8x8xf32> to vector<16x8xf32>
    %c0_56 = arith.constant 0 : index
    %c24_57 = arith.constant 24 : index
    %100 = vector.load %arg16[%c0_56, %c24_57] : memref<16x32xf32, #tpu.memory_space<vmem>>, vector<16x8xf32>
    tpu.vector_store %arg16[%c0_56, %c24_57], %99 {strides = array<i32>} : memref<16x32xf32, #tpu.memory_space<vmem>>, vector<16x8xf32>,
    %c0_58 = arith.constant 0 : index
    %c0_59 = arith.constant 0 : index
    %101 = vector.load %arg16[%c0_58, %c0_59] : memref<16x32xf32, #tpu.memory_space<vmem>>, vector<16x32xf32>
    %c0_60 = arith.constant 0 : index
    %c0_61 = arith.constant 0 : index
    %102 = vector.load %arg11[%c0_60, %c0_61] : memref<32x32xf32, #tpu.memory_space<vmem>>, vector<32x32xf32>
    %cst_62 = arith.constant dense<0.000000e+00> : vector<16x32xf32>
    %103 = tpu.matmul %101, %102, %cst_62 {dimension_numbers = #tpu.dot_dimension_numbers<[1], [0], [0], [1], [0, 0, 1, 1], [], []>} : vector<16x32xf32>, vector<32x32xf32>, vector<16x32xf32> -> vector<16x32xf32>
    %c0_63 = arith.constant 0 : index
    %c0_64 = arith.constant 0 : index
    %104 = vector.load %arg12[%c0_63, %c0_64] : memref<1x32xf32, #tpu.memory_space<vmem>>, vector<1x32xf32>
    %105 = vector.broadcast %104 : vector<1x32xf32> to vector<16x32xf32>
    %106 = arith.addf %103, %105 : vector<16x32xf32>
    %107 = vector.shape_cast %106 : vector<16x32xf32> to vector<2x8x32xf32>
    %c0_65 = arith.constant 0 : index
    %c0_66 = arith.constant 0 : index
    %c0_67 = arith.constant 0 : index
    %108 = vector.load %arg13[%c0_65, %c0_66, %c0_67] : memref<2x8x32xf32, #tpu.memory_space<vmem>>, vector<2x8x32xf32>
    tpu.vector_store %arg13[%c0_65, %c0_66, %c0_67], %107 {strides = array<i32>} : memref<2x8x32xf32, #tpu.memory_space<vmem>>, vector<2x8x32xf32>,
    return
  }
  func.func @transform_0(%arg0: i32, %arg1: i32) -> (i32, i32) {
    %c0_i32 = arith.constant 0 : i32
    %c0_i32_0 = arith.constant 0 : i32
    return %arg1, %c0_i32 : i32, i32
  }
  func.func @transform_1(%arg0: i32, %arg1: i32) -> (i32, i32, i32) {
    %c0_i32 = arith.constant 0 : i32
    %c0_i32_0 = arith.constant 0 : i32
    return %arg0, %arg1, %c0_i32 : i32, i32, i32
  }
  func.func @transform_2(%arg0: i32, %arg1: i32) -> (i32, i32, i32) {
    %c0_i32 = arith.constant 0 : i32
    %c0_i32_0 = arith.constant 0 : i32
    %c0_i32_1 = arith.constant 0 : i32
    return %arg0, %c0_i32, %c0_i32_0 : i32, i32, i32
  }
  func.func @transform_3(%arg0: i32, %arg1: i32) -> (i32, i32) {
    %c0_i32 = arith.constant 0 : i32
    %c0_i32_0 = arith.constant 0 : i32
    %c0_i32_1 = arith.constant 0 : i32
    return %c0_i32, %c0_i32_0 : i32, i32
  }
  func.func @transform_4(%arg0: i32, %arg1: i32) -> (i32, i32) {
    %c0_i32 = arith.constant 0 : i32
    %c0_i32_0 = arith.constant 0 : i32
    %c0_i32_1 = arith.constant 0 : i32
    return %c0_i32, %c0_i32_0 : i32, i32
  }
  func.func @transform_5(%arg0: i32, %arg1: i32) -> (i32, i32) {
    %c0_i32 = arith.constant 0 : i32
    %c0_i32_0 = arith.constant 0 : i32
    %c0_i32_1 = arith.constant 0 : i32
    return %c0_i32, %c0_i32_0 : i32, i32
  }
  func.func @transform_6(%arg0: i32, %arg1: i32) -> (i32, i32) {
    %c0_i32 = arith.constant 0 : i32
    %c0_i32_0 = arith.constant 0 : i32
    %c0_i32_1 = arith.constant 0 : i32
    return %c0_i32, %c0_i32_0 : i32, i32
  }
  func.func @transform_7(%arg0: i32, %arg1: i32) -> (i32, i32) {
    %c0_i32 = arith.constant 0 : i32
    %c0_i32_0 = arith.constant 0 : i32
    %c0_i32_1 = arith.constant 0 : i32
    return %c0_i32, %c0_i32_0 : i32, i32
  }
  func.func @transform_8(%arg0: i32, %arg1: i32) -> (i32, i32) {
    %c0_i32 = arith.constant 0 : i32
    %c0_i32_0 = arith.constant 0 : i32
    %c0_i32_1 = arith.constant 0 : i32
    return %c0_i32, %c0_i32_0 : i32, i32
  }
  func.func @transform_9(%arg0: i32, %arg1: i32) -> (i32, i32) {
    %c0_i32 = arith.constant 0 : i32
    %c0_i32_0 = arith.constant 0 : i32
    %c0_i32_1 = arith.constant 0 : i32
    return %c0_i32, %c0_i32_0 : i32, i32
  }
  func.func @transform_10(%arg0: i32, %arg1: i32) -> (i32, i32) {
    %c0_i32 = arith.constant 0 : i32
    %c0_i32_0 = arith.constant 0 : i32
    %c0_i32_1 = arith.constant 0 : i32
    return %c0_i32, %c0_i32_0 : i32, i32
  }
  func.func @transform_11(%arg0: i32, %arg1: i32) -> (i32, i32, i32) {
    %c0_i32 = arith.constant 0 : i32
    %c0_i32_0 = arith.constant 0 : i32
    return %arg0, %arg1, %c0_i32 : i32, i32, i32
  }
}

</mosaic_0001>

<llo_original>
// kernel: tpu_custom_call.1
$region0: #{tpu_custom_call.1}
  #allocation0 [shape = 'u32[]', space=smem, size = 0x4, offset = 0x4, fixed_abs, tag = 'smem constant byte address 0x4 - core index']
  #allocation1 [shape = 'u32[144,128]{1,0:T(1,128)}', space=vmem, size = 0x12000, scoped, tag = 'internal scratch']
  #allocation2 [shape = 'f32[2,8,32]{2,1,0:T(8,128)}', space=vmem, size = 0x2000, scoped, tag = 'scratch operand']
  #allocation3 [shape = 'f32[2,8,32]{2,1,0:T(8,128)}', space=vmem, size = 0x2000, scoped, tag = 'scratch operand']
  #allocation4 [shape = 'f32[16,32]{1,0:T(8,128)}', space=vmem, size = 0x2000, scoped, tag = 'scratch operand']
  %s0 = inlined_call_operand.hbm [shape: bf16[8,8], index: 0, kind: input, shape index: {}]
  %s1 = inlined_call_operand.hbm [shape: f32[2,8,32], index: 1, kind: input, shape index: {}]
  %s2 = inlined_call_operand.hbm [shape: f32[2,8,32], index: 2, kind: input, shape index: {}]
  %s3 = inlined_call_operand.hbm [shape: f32[32,32], index: 3, kind: input, shape index: {}]
  %s4 = inlined_call_operand.vmem [shape: f32[1,32], index: 4, kind: input, shape index: {}]
  %s5 = inlined_call_operand.hbm [shape: f32[32,32], index: 5, kind: input, shape index: {}]
  %s6 = inlined_call_operand.vmem [shape: f32[1,32], index: 6, kind: input, shape index: {}]
  %s7 = inlined_call_operand.hbm [shape: f32[32,32], index: 7, kind: input, shape index: {}]
  %s8 = inlined_call_operand.hbm [shape: f32[1,32], index: 8, kind: input, shape index: {}]
  %s9 = inlined_call_operand.vmem [shape: f32[32,32], index: 9, kind: input, shape index: {}]
  %s10 = inlined_call_operand.vmem [shape: f32[1,32], index: 10, kind: input, shape index: {}]
  %s11 = inlined_call_operand.hbm [shape: f32[2,8,32], index: 11, kind: output, shape index: {}]
  %s12 = sld [smem:[#allocation0]]
  $region86: #{tpu_custom_call.1} parent=0
    _
  %s14 = ssub.s32 1, %s12
  %s15 = scalar_select 0, %s14, %s12
  $region1: #{tpu_custom_call.1} parent=0
    #allocation5 [shape = 'u8[2048]{0}', space=vmem, size = 0x800, scoped, tag = 'input window, operand 0, single buffered']
    #allocation6 [shape = 's32[1]{0}', space=sflag, size = 0x4, scoped, tag = 'scoped memory for tpu_custom_call.1']
    #allocation7 [shape = 's32[1]{0}', space=sflag, size = 0x4, scoped, tag = 'scoped memory for tpu_custom_call.1']
    #allocation8 [shape = 'u8[8192]{0}', space=vmem, size = 0x2000, scoped, tag = 'input window, operand 1, single buffered']
    #allocation9 [shape = 's32[1]{0}', space=sflag, size = 0x4, scoped, tag = 'scoped memory for tpu_custom_call.1']
    #allocation10 [shape = 'u8[8192]{0}', space=vmem, size = 0x2000, scoped, tag = 'input window, operand 2, single buffered']
    #allocation11 [shape = 'u8[16384]{0}', space=vmem, size = 0x4000, scoped, tag = 'input window, operand 3, single buffered']
    #allocation12 [shape = 's32[1]{0}', space=sflag, size = 0x4, scoped, tag = 'scoped memory for tpu_custom_call.1']
    #allocation13 [shape = 'u8[16384]{0}', space=vmem, size = 0x4000, scoped, tag = 'input window, operand 5, single buffered']
    #allocation14 [shape = 'u8[16384]{0}', space=vmem, size = 0x4000, scoped, tag = 'input window, operand 7, single buffered']
    #allocation15 [shape = 's32[1]{0}', space=sflag, size = 0x4, scoped, tag = 'scoped memory for tpu_custom_call.1']
    #allocation16 [shape = 'u8[512]{0}', space=vmem, size = 0x400, scoped, tag = 'input window, operand 8, single buffered']
    #allocation17 [shape = 'u8[8192]{0}', space=vmem, size = 0x2000, scoped, tag = 'output window, operand 0, single buffered']
    %16 = vsyncpa [#allocation6], 0
    %17 = vsyncpa [#allocation9], 0
    %18 = vsyncpa [#allocation12], 0
    %19 = vsyncpa [#allocation15], 0
    %20 = vsyncpa [#allocation7], 0
    // Predicated region
    $region2: #{tpu_custom_call.1} parent=1 // pred_check
      _
    $region3: #{tpu_custom_call.1} parent=1 // pred_check_branch
      %22 = sbr.rel (0) target = $region5
    $region4: #{tpu_custom_call.1} parent=1 // pred_region
      %s24 = ssub.s32 64, 64
      %25 = vsyncadd [#allocation6], %s24
      %s27 = sshll.u32 [#allocation5], 4
      %s28 = int_to_ptr.vmem [resolvable:$true] %s27
      %30 = dma.hbm_to_vmem [thread:$0]  %s0, 64, %s28, [#allocation6]
    $region5: #{tpu_custom_call.1} parent=1 // pred_fallthru
      _
    // Predicated region
    $region6: #{tpu_custom_call.1} parent=1 // pred_check
      _
    $region7: #{tpu_custom_call.1} parent=1 // pred_check_branch
      %32 = sbr.rel (0) target = $region9
    $region8: #{tpu_custom_call.1} parent=1 // pred_region
      %s34 = ssub.s32 256, 256
      %35 = vsyncadd [#allocation9], %s34
      %s36 = sshll.u32 [#allocation8], 4
      %s37 = int_to_ptr.vmem [resolvable:$true] %s36
      %42 = dma.hbm_to_vmem [thread:$0]  %s1, 256, %s37, [#allocation9], 128, 128, 8
    $region9: #{tpu_custom_call.1} parent=1 // pred_fallthru
      _
    // Predicated region
    $region10: #{tpu_custom_call.1} parent=1 // pred_check
      _
    $region11: #{tpu_custom_call.1} parent=1 // pred_check_branch
      %44 = sbr.rel (0) target = $region13
    $region12: #{tpu_custom_call.1} parent=1 // pred_region
      %s46 = ssub.s32 256, 256
      %47 = vsyncadd [#allocation9], %s46
      %s48 = sshll.u32 [#allocation10], 4
      %s49 = int_to_ptr.vmem [resolvable:$true] %s48
      %54 = dma.hbm_to_vmem [thread:$0]  %s2, 256, %s49, [#allocation9], 128, 128, 8
    $region13: #{tpu_custom_call.1} parent=1 // pred_fallthru
      _
    // Predicated region
    $region14: #{tpu_custom_call.1} parent=1 // pred_check
      _
    $region15: #{tpu_custom_call.1} parent=1 // pred_check_branch
      %56 = sbr.rel (0) target = $region17
    $region16: #{tpu_custom_call.1} parent=1 // pred_region
      %s58 = ssub.s32 512, 512
      %59 = vsyncadd [#allocation12], %s58
      %s60 = sshll.u32 [#allocation11], 4
      %s61 = int_to_ptr.vmem [resolvable:$true] %s60
      %66 = dma.hbm_to_vmem [thread:$0]  %s3, 512, %s61, [#allocation12], 128, 128, 8
    $region17: #{tpu_custom_call.1} parent=1 // pred_fallthru
      _
    // Predicated region
    $region18: #{tpu_custom_call.1} parent=1 // pred_check
      _
    $region19: #{tpu_custom_call.1} parent=1 // pred_check_branch
      %68 = sbr.rel (0) target = $region21
    $region20: #{tpu_custom_call.1} parent=1 // pred_region
      _
    $region21: #{tpu_custom_call.1} parent=1 // pred_fallthru
      _
    // Predicated region
    $region22: #{tpu_custom_call.1} parent=1 // pred_check
      _
    $region23: #{tpu_custom_call.1} parent=1 // pred_check_branch
      %70 = sbr.rel (0) target = $region25
    $region24: #{tpu_custom_call.1} parent=1 // pred_region
      %s72 = ssub.s32 512, 512
      %73 = vsyncadd [#allocation12], %s72
      %s74 = sshll.u32 [#allocation13], 4
      %s75 = int_to_ptr.vmem [resolvable:$true] %s74
      %80 = dma.hbm_to_vmem [thread:$0]  %s5, 512, %s75, [#allocation12], 128, 128, 8
    $region25: #{tpu_custom_call.1} parent=1 // pred_fallthru
      _
    // Predicated region
    $region26: #{tpu_custom_call.1} parent=1 // pred_check
      _
    $region27: #{tpu_custom_call.1} parent=1 // pred_check_branch
      %82 = sbr.rel (0) target = $region29
    $region28: #{tpu_custom_call.1} parent=1 // pred_region
      _
    $region29: #{tpu_custom_call.1} parent=1 // pred_fallthru
      _
    // Predicated region
    $region30: #{tpu_custom_call.1} parent=1 // pred_check
      _
    $region31: #{tpu_custom_call.1} parent=1 // pred_check_branch
      %84 = sbr.rel (0) target = $region33
    $region32: #{tpu_custom_call.1} parent=1 // pred_region
      %s86 = ssub.s32 512, 512
      %87 = vsyncadd [#allocation15], %s86
      %s88 = sshll.u32 [#allocation14], 4
      %s89 = int_to_ptr.vmem [resolvable:$true] %s88
      %94 = dma.hbm_to_vmem [thread:$0]  %s7, 512, %s89, [#allocation15], 128, 128, 8
    $region33: #{tpu_custom_call.1} parent=1 // pred_fallthru
      _
    // Predicated region
    $region34: #{tpu_custom_call.1} parent=1 // pred_check
      _
    $region35: #{tpu_custom_call.1} parent=1 // pred_check_branch
      %96 = sbr.rel (0) target = $region37
    $region36: #{tpu_custom_call.1} parent=1 // pred_region
      %s98 = ssub.s32 16, 16
      %99 = vsyncadd [#allocation15], %s98
      %s101 = sshll.u32 [#allocation16], 4
      %s102 = int_to_ptr.vmem [resolvable:$true] %s101
      %104 = dma.hbm_to_vmem [thread:$0]  %s8, 16, %s102, [#allocation15]
    $region37: #{tpu_custom_call.1} parent=1 // pred_fallthru
      _
    // Predicated region
    $region38: #{tpu_custom_call.1} parent=1 // pred_check
      _
    $region39: #{tpu_custom_call.1} parent=1 // pred_check_branch
      %106 = sbr.rel (0) target = $region41
    $region40: #{tpu_custom_call.1} parent=1 // pred_region
      _
    $region41: #{tpu_custom_call.1} parent=1 // pred_fallthru
      _
    // Predicated region
    $region42: #{tpu_custom_call.1} parent=1 // pred_check
      _
    $region43: #{tpu_custom_call.1} parent=1 // pred_check_branch
      %108 = sbr.rel (0) target = $region45
    $region44: #{tpu_custom_call.1} parent=1 // pred_region
      _
    $region45: #{tpu_custom_call.1} parent=1 // pred_fallthru
      _
    // Predicated region
    $region46: #{tpu_custom_call.1} parent=1 // pred_check
      _
    $region47: #{tpu_custom_call.1} parent=1 // pred_check_branch
      %110 = sbr.rel (0) target = $region49
    $region48: #{tpu_custom_call.1} parent=1 // pred_region
      %111 = dma.done [#allocation6], 64
    $region49: #{tpu_custom_call.1} parent=1 // pred_fallthru
      _
    // Predicated region
    $region50: #{tpu_custom_call.1} parent=1 // pred_check
      _
    $region51: #{tpu_custom_call.1} parent=1 // pred_check_branch
      %113 = sbr.rel (0) target = $region53
    $region52: #{tpu_custom_call.1} parent=1 // pred_region
      %114 = dma.done [#allocation9], 256
    $region53: #{tpu_custom_call.1} parent=1 // pred_fallthru
      _
    // Predicated region
    $region54: #{tpu_custom_call.1} parent=1 // pred_check
      _
    $region55: #{tpu_custom_call.1} parent=1 // pred_check_branch
      %116 = sbr.rel (0) target = $region57
    $region56: #{tpu_custom_call.1} parent=1 // pred_region
      %117 = dma.done [#allocation9], 256
    $region57: #{tpu_custom_call.1} parent=1 // pred_fallthru
      _
    // Predicated region
    $region58: #{tpu_custom_call.1} parent=1 // pred_check
      _
    $region59: #{tpu_custom_call.1} parent=1 // pred_check_branch
      %119 = sbr.rel (0) target = $region61
    $region60: #{tpu_custom_call.1} parent=1 // pred_region
      %120 = dma.done [#allocation12], 512
    $region61: #{tpu_custom_call.1} parent=1 // pred_fallthru
      _
    // Predicated region
    $region62: #{tpu_custom_call.1} parent=1 // pred_check
      _
    $region63: #{tpu_custom_call.1} parent=1 // pred_check_branch
      %122 = sbr.rel (0) target = $region65
    $region64: #{tpu_custom_call.1} parent=1 // pred_region
      %123 = dma.done [#allocation12], 512
    $region65: #{tpu_custom_call.1} parent=1 // pred_fallthru
      _
    // Predicated region
    $region66: #{tpu_custom_call.1} parent=1 // pred_check
      _
    $region67: #{tpu_custom_call.1} parent=1 // pred_check_branch
      %125 = sbr.rel (0) target = $region69
    $region68: #{tpu_custom_call.1} parent=1 // pred_region
      %126 = dma.done [#allocation15], 512
    $region69: #{tpu_custom_call.1} parent=1 // pred_fallthru
      _
    // Predicated region
    $region70: #{tpu_custom_call.1} parent=1 // pred_check
      _
    $region71: #{tpu_custom_call.1} parent=1 // pred_check_branch
      %128 = sbr.rel (0) target = $region73
    $region72: #{tpu_custom_call.1} parent=1 // pred_region
      %129 = dma.done [#allocation15], 16
    $region73: #{tpu_custom_call.1} parent=1 // pred_fallthru
      _
    %p130 = scmp.eq.s32.totalorder 0, 0
    // Predicated region
    $region74: #{tpu_custom_call.1} parent=1 // pred_check
      %p131 = pneg %p130
    $region75: #{tpu_custom_call.1} parent=1 // pred_check_branch
      %133 = sbr.rel (%p131) target = $region77
    $region76: #{tpu_custom_call.1} parent=1 // pred_region
      %v134 = vld [vmem:[#allocation10] sm:$0xff]
      %v135 = vld [vmem:[#allocation10 + $0x8] sm:$0xff]
      %v136 = vld [vmem:[#allocation13] sm:$0xff]
      %v137 = vld [vmem:[#allocation13 + $0x8] sm:$0xff]
      %v138 = vld [vmem:[#allocation13 + $0x10] sm:$0xff]
      %v139 = vld [vmem:[#allocation13 + $0x18] sm:$0xff]
      %v140 = vld [vmem:[%s6] sm:$0x1]
      %v142 = vlaneseq
      %v143 = vshrl.u32 %v142, 7
      %v144 = vsub.s32 0, %v143
      %v145 = vrot.slane %v140, %v144
      %vm147 = vcmask 261120
      %v149 = vsel %vm147, %v134, 0
      %v152 = vsel %vm147, %v135, 0
      %154 = vmatprep.subr.mxu0 0.0
      %155 = vmatpush1.msra.mxu0 %v136
      %156 = vmatprep.subr.mxu0 0.0
      %157 = vmatpush1.msra.mxu0 %v137
      %158 = vmatprep.subr.mxu0 0.0
      %159 = vmatpush1.msra.mxu0 %v138
      %160 = vmatprep.subr.mxu0 0.0
      %161 = vmatpush1.msra.mxu0 %v139
      %162 = vmatprep.subr.mxu0 0.0
      %163 = vmatpush1.msra.mxu0 0.0
      %164 = vmatprep.subr.mxu0 0.0
      %165 = vmatpush1.msra.mxu0 0.0
      %166 = vmatprep.subr.mxu0 0.0
      %167 = vmatpush1.msra.mxu0 0.0
      %168 = vmatprep.subr.mxu0 0.0
      %169 = vmatpush1.msra.mxu0 0.0
      %170 = vmatprep.subr.mxu0 0.0
      %171 = vmatpush1.msra.mxu0 0.0
      %172 = vmatprep.subr.mxu0 0.0
      %173 = vmatpush1.msra.mxu0 0.0
      %174 = vmatprep.subr.mxu0 0.0
      %175 = vmatpush1.msra.mxu0 0.0
      %176 = vmatprep.subr.mxu0 0.0
      %177 = vmatpush1.msra.mxu0 0.0
      %178 = vmatprep.subr.mxu0 0.0
      %179 = vmatpush1.msra.mxu0 0.0
      %180 = vmatprep.subr.mxu0 0.0
      %181 = vmatpush1.msra.mxu0 0.0
      %182 = vmatprep.subr.mxu0 0.0
      %183 = vmatpush1.msra.mxu0 0.0
      %184 = vmatprep.subr.mxu0 0.0
      %185 = vmatpush1.msra.mxu0 0.0
      %186 = vmatprep.subr.mxu0 0.0
      %187 = vmatpush1.msra.mxu0 0.0
      %188 = vmatprep.subr.mxu0 0.0
      %189 = vmatpush1.msra.mxu0 0.0
      %190 = vmatprep.subr.mxu0 0.0
      %191 = vmatpush1.msra.mxu0 0.0
      %192 = vmatprep.subr.mxu0 0.0
      %193 = vmatpush1.msra.mxu0 0.0
      %194 = vmatprep.subr.mxu0 0.0
      %195 = vmatpush1.msra.mxu0 0.0
      %196 = vmatprep.subr.mxu0 0.0
      %197 = vmatpush1.msra.mxu0 0.0
      %198 = vmatprep.subr.mxu0 0.0
      %199 = vmatpush1.msra.mxu0 0.0
      %200 = vmatprep.subr.mxu0 0.0
      %201 = vmatpush1.msra.mxu0 0.0
      %202 = vmatprep.subr.mxu0 0.0
      %203 = vmatpush1.msra.mxu0 0.0
      %204 = vmatprep.subr.mxu0 0.0
      %205 = vmatpush1.msra.mxu0 0.0
      %206 = vmatprep.subr.mxu0 0.0
      %207 = vmatpush1.msra.mxu0 0.0
      %208 = vmatprep.subr.mxu0 0.0
      %209 = vmatpush1.msra.mxu0 0.0
      %210 = vmatprep.subr.mxu0 0.0
      %211 = vmatpush1.msra.mxu0 0.0
      %212 = vmatprep.subr.mxu0 0.0
      %213 = vmatpush1.msra.mxu0 0.0
      %214 = vmatprep.subr.mxu0 0.0
      %215 = vmatpush1.msra.mxu0 0.0
      %216 = vmatprep.subr.mxu0 0.0
      %217 = vmatpush1.msra.mxu0 0.0
      %218 = vmatprep.mubr.f32.mxu0 0.0
      %219 = vmatmul.mubr.f32.gmra.mrb[0].mxu0 %v149
      %v220 = vpop.f32.mrb[0].mxu0
      %v221 = vadd.f32 %v145, %v220
      %v222 = vpop.f32.mrb[0].mxu0
      %223 = vmatprep.mubr.f32.mxu0 0.0
      %224 = vmatmul.mubr.f32.gmra.mrb[0].mxu0 %v152
      %v225 = vpop.f32.mrb[0].mxu0
      %v226 = vadd.f32 %v145, %v225
      %v227 = vpop.f32.mrb[0].mxu0
      %228 = vdwg.mxu0
      %v229 = vld [vmem:[#allocation14] sm:$0xff]
      %v230 = vld [vmem:[#allocation14 + $0x8] sm:$0xff]
      %v231 = vld [vmem:[#allocation14 + $0x10] sm:$0xff]
      %v232 = vld [vmem:[#allocation14 + $0x18] sm:$0xff]
      %v233 = vld [vmem:[#allocation16] sm:$0x1]
      %v235 = vlaneseq
      %v236 = vshrl.u32 %v235, 7
      %v237 = vsub.s32 0, %v236
      %v238 = vrot.slane %v233, %v237
      %240 = vmatprep.subr.mxu0 0.0
      %241 = vmatpush1.msra.mxu0 %v229
      %242 = vmatprep.subr.mxu0 0.0
      %243 = vmatpush1.msra.mxu0 %v230
      %244 = vmatprep.subr.mxu0 0.0
      %245 = vmatpush1.msra.mxu0 %v231
      %246 = vmatprep.subr.mxu0 0.0
      %247 = vmatpush1.msra.mxu0 %v232
      %248 = vmatprep.subr.mxu0 0.0
      %249 = vmatpush1.msra.mxu0 0.0
      %250 = vmatprep.subr.mxu0 0.0
      %251 = vmatpush1.msra.mxu0 0.0
      %252 = vmatprep.subr.mxu0 0.0
      %253 = vmatpush1.msra.mxu0 0.0
      %254 = vmatprep.subr.mxu0 0.0
      %255 = vmatpush1.msra.mxu0 0.0
      %256 = vmatprep.subr.mxu0 0.0
      %257 = vmatpush1.msra.mxu0 0.0
      %258 = vmatprep.subr.mxu0 0.0
      %259 = vmatpush1.msra.mxu0 0.0
      %260 = vmatprep.subr.mxu0 0.0
      %261 = vmatpush1.msra.mxu0 0.0
      %262 = vmatprep.subr.mxu0 0.0
      %263 = vmatpush1.msra.mxu0 0.0
      %264 = vmatprep.subr.mxu0 0.0
      %265 = vmatpush1.msra.mxu0 0.0
      %266 = vmatprep.subr.mxu0 0.0
      %267 = vmatpush1.msra.mxu0 0.0
      %268 = vmatprep.subr.mxu0 0.0
      %269 = vmatpush1.msra.mxu0 0.0
      %270 = vmatprep.subr.mxu0 0.0
      %271 = vmatpush1.msra.mxu0 0.0
      %272 = vmatprep.subr.mxu0 0.0
      %273 = vmatpush1.msra.mxu0 0.0
      %274 = vmatprep.subr.mxu0 0.0
      %275 = vmatpush1.msra.mxu0 0.0
      %276 = vmatprep.subr.mxu0 0.0
      %277 = vmatpush1.msra.mxu0 0.0
      %278 = vmatprep.subr.mxu0 0.0
      %279 = vmatpush1.msra.mxu0 0.0
      %280 = vmatprep.subr.mxu0 0.0
      %281 = vmatpush1.msra.mxu0 0.0
      %282 = vmatprep.subr.mxu0 0.0
      %283 = vmatpush1.msra.mxu0 0.0
      %284 = vmatprep.subr.mxu0 0.0
      %285 = vmatpush1.msra.mxu0 0.0
      %286 = vmatprep.subr.mxu0 0.0
      %287 = vmatpush1.msra.mxu0 0.0
      %288 = vmatprep.subr.mxu0 0.0
      %289 = vmatpush1.msra.mxu0 0.0
      %290 = vmatprep.subr.mxu0 0.0
      %291 = vmatpush1.msra.mxu0 0.0
      %292 = vmatprep.subr.mxu0 0.0
      %293 = vmatpush1.msra.mxu0 0.0
      %294 = vmatprep.subr.mxu0 0.0
      %295 = vmatpush1.msra.mxu0 0.0
      %296 = vmatprep.subr.mxu0 0.0
      %297 = vmatpush1.msra.mxu0 0.0
      %298 = vmatprep.subr.mxu0 0.0
      %299 = vmatpush1.msra.mxu0 0.0
      %300 = vmatprep.subr.mxu0 0.0
      %301 = vmatpush1.msra.mxu0 0.0
      %302 = vmatprep.subr.mxu0 0.0
      %303 = vmatpush1.msra.mxu0 0.0
      %304 = vmatprep.mubr.f32.mxu0 0.0
      %305 = vmatmul.mubr.f32.gmra.mrb[0].mxu0 %v149
      %v306 = vpop.f32.mrb[0].mxu0
      %v307 = vadd.f32 %v238, %v306
      %v308 = vpop.f32.mrb[0].mxu0
      %309 = vmatprep.mubr.f32.mxu0 0.0
      %310 = vmatmul.mubr.f32.gmra.mrb[0].mxu0 %v152
      %v311 = vpop.f32.mrb[0].mxu0
      %v312 = vadd.f32 %v238, %v311
      %v313 = vpop.f32.mrb[0].mxu0
      %314 = vdwg.mxu0
      %315 = vst.msk [vmem:[#allocation2] sm:$0xff] %vm147, %v221
      %316 = vst.msk [vmem:[#allocation2 + $0x8] sm:$0xff] %vm147, %v226
      %317 = vst.msk [vmem:[#allocation3] sm:$0xff] %vm147, %v307
      %318 = vst.msk [vmem:[#allocation3 + $0x8] sm:$0xff] %vm147, %v312
    $region77: #{tpu_custom_call.1} parent=1 // pred_fallthru
      _
    %v319 = vld [vmem:[#allocation8] sm:$0xff]
    %v320 = vld [vmem:[#allocation8 + $0x8] sm:$0xff]
    %v321 = vld [vmem:[#allocation11] sm:$0xff]
    %v322 = vld [vmem:[#allocation11 + $0x8] sm:$0xff]
    %v323 = vld [vmem:[#allocation11 + $0x10] sm:$0xff]
    %v324 = vld [vmem:[#allocation11 + $0x18] sm:$0xff]
    %v325 = vld [vmem:[%s4] sm:$0x1]
    %v327 = vlaneseq
    %v328 = vshrl.u32 %v327, 7
    %v329 = vsub.s32 0, %v328
    %v330 = vrot.slane %v325, %v329
    %vm332 = vcmask 261120
    %v334 = vsel %vm332, %v319, 0
    %v337 = vsel %vm332, %v320, 0
    %339 = vmatprep.subr.mxu0 0.0
    %340 = vmatpush1.msra.mxu0 %v321
    %341 = vmatprep.subr.mxu0 0.0
    %342 = vmatpush1.msra.mxu0 %v322
    %343 = vmatprep.subr.mxu0 0.0
    %344 = vmatpush1.msra.mxu0 %v323
    %345 = vmatprep.subr.mxu0 0.0
    %346 = vmatpush1.msra.mxu0 %v324
    %347 = vmatprep.subr.mxu0 0.0
    %348 = vmatpush1.msra.mxu0 0.0
    %349 = vmatprep.subr.mxu0 0.0
    %350 = vmatpush1.msra.mxu0 0.0
    %351 = vmatprep.subr.mxu0 0.0
    %352 = vmatpush1.msra.mxu0 0.0
    %353 = vmatprep.subr.mxu0 0.0
    %354 = vmatpush1.msra.mxu0 0.0
    %355 = vmatprep.subr.mxu0 0.0
    %356 = vmatpush1.msra.mxu0 0.0
    %357 = vmatprep.subr.mxu0 0.0
    %358 = vmatpush1.msra.mxu0 0.0
    %359 = vmatprep.subr.mxu0 0.0
    %360 = vmatpush1.msra.mxu0 0.0
    %361 = vmatprep.subr.mxu0 0.0
    %362 = vmatpush1.msra.mxu0 0.0
    %363 = vmatprep.subr.mxu0 0.0
    %364 = vmatpush1.msra.mxu0 0.0
    %365 = vmatprep.subr.mxu0 0.0
    %366 = vmatpush1.msra.mxu0 0.0
    %367 = vmatprep.subr.mxu0 0.0
    %368 = vmatpush1.msra.mxu0 0.0
    %369 = vmatprep.subr.mxu0 0.0
    %370 = vmatpush1.msra.mxu0 0.0
    %371 = vmatprep.subr.mxu0 0.0
    %372 = vmatpush1.msra.mxu0 0.0
    %373 = vmatprep.subr.mxu0 0.0
    %374 = vmatpush1.msra.mxu0 0.0
    %375 = vmatprep.subr.mxu0 0.0
    %376 = vmatpush1.msra.mxu0 0.0
    %377 = vmatprep.subr.mxu0 0.0
    %378 = vmatpush1.msra.mxu0 0.0
    %379 = vmatprep.subr.mxu0 0.0
    %380 = vmatpush1.msra.mxu0 0.0
    %381 = vmatprep.subr.mxu0 0.0
    %382 = vmatpush1.msra.mxu0 0.0
    %383 = vmatprep.subr.mxu0 0.0
    %384 = vmatpush1.msra.mxu0 0.0
    %385 = vmatprep.subr.mxu0 0.0
    %386 = vmatpush1.msra.mxu0 0.0
    %387 = vmatprep.subr.mxu0 0.0
    %388 = vmatpush1.msra.mxu0 0.0
    %389 = vmatprep.subr.mxu0 0.0
    %390 = vmatpush1.msra.mxu0 0.0
    %391 = vmatprep.subr.mxu0 0.0
    %392 = vmatpush1.msra.mxu0 0.0
    %393 = vmatprep.subr.mxu0 0.0
    %394 = vmatpush1.msra.mxu0 0.0
    %395 = vmatprep.subr.mxu0 0.0
    %396 = vmatpush1.msra.mxu0 0.0
    %397 = vmatprep.subr.mxu0 0.0
    %398 = vmatpush1.msra.mxu0 0.0
    %399 = vmatprep.subr.mxu0 0.0
    %400 = vmatpush1.msra.mxu0 0.0
    %401 = vmatprep.subr.mxu0 0.0
    %402 = vmatpush1.msra.mxu0 0.0
    %403 = vmatprep.mubr.f32.mxu0 0.0
    %404 = vmatmul.mubr.f32.gmra.mrb[0].mxu0 %v334
    %v405 = vpop.f32.mrb[0].mxu0
    %v406 = vadd.f32 %v330, %v405
    %v407 = vpop.f32.mrb[0].mxu0
    %408 = vmatprep.mubr.f32.mxu0 0.0
    %409 = vmatmul.mubr.f32.gmra.mrb[0].mxu0 %v337
    %v410 = vpop.f32.mrb[0].mxu0
    %v411 = vadd.f32 %v330, %v410
    %v412 = vpop.f32.mrb[0].mxu0
    %413 = vdwg.mxu0
    %v414 = vld [vmem:[#allocation5] sm:$0xf]
    %v415 = vunpack.c.l.bf16 %v414
    %v416 = vld [vmem:[#allocation2] sm:$0xff]
    %v417 = vld [vmem:[#allocation2 + $0x8] sm:$0xff]
    %v418 = vld [vmem:[#allocation3] sm:$0xff]
    %v419 = vld [vmem:[#allocation3 + $0x8] sm:$0xff]
    %vm420 = vcmask 64512
    %v422 = vsel %vm420, %v406, 0
    %v425 = vsel %vm420, %v416, 0
    %427 = vmatprep.subr.mxu0 0.0
    %428 = vmatpush1.xpose.msra.mxu0 %v425
    %429 = vmatprep.subr.mxu0 0.0
    %430 = vmatpush1.xpose.msra.mxu0 0.0
    %431 = vmatprep.subr.mxu0 0.0
    %432 = vmatpush1.xpose.msra.mxu0 0.0
    %433 = vmatprep.subr.mxu0 0.0
    %434 = vmatpush1.xpose.msra.mxu0 0.0
    %435 = vmatprep.subr.mxu0 0.0
    %436 = vmatpush1.xpose.msra.mxu0 0.0
    %437 = vmatprep.subr.mxu0 0.0
    %438 = vmatpush1.xpose.msra.mxu0 0.0
    %439 = vmatprep.subr.mxu0 0.0
    %440 = vmatpush1.xpose.msra.mxu0 0.0
    %441 = vmatprep.subr.mxu0 0.0
    %442 = vmatpush1.xpose.msra.mxu0 0.0
    %443 = vmatprep.subr.mxu0 0.0
    %444 = vmatpush1.xpose.msra.mxu0 0.0
    %445 = vmatprep.subr.mxu0 0.0
    %446 = vmatpush1.xpose.msra.mxu0 0.0
    %447 = vmatprep.subr.mxu0 0.0
    %448 = vmatpush1.xpose.msra.mxu0 0.0
    %449 = vmatprep.subr.mxu0 0.0
    %450 = vmatpush1.xpose.msra.mxu0 0.0
    %451 = vmatprep.subr.mxu0 0.0
    %452 = vmatpush1.xpose.msra.mxu0 0.0
    %453 = vmatprep.subr.mxu0 0.0
    %454 = vmatpush1.xpose.msra.mxu0 0.0
    %455 = vmatprep.subr.mxu0 0.0
    %456 = vmatpush1.xpose.msra.mxu0 0.0
    %457 = vmatprep.subr.mxu0 0.0
    %458 = vmatpush1.xpose.msra.mxu0 0.0
    %459 = vmatprep.subr.mxu0 0.0
    %460 = vmatpush1.xpose.msra.mxu0 0.0
    %461 = vmatprep.subr.mxu0 0.0
    %462 = vmatpush1.xpose.msra.mxu0 0.0
    %463 = vmatprep.subr.mxu0 0.0
    %464 = vmatpush1.xpose.msra.mxu0 0.0
    %465 = vmatprep.subr.mxu0 0.0
    %466 = vmatpush1.xpose.msra.mxu0 0.0
    %467 = vmatprep.subr.mxu0 0.0
    %468 = vmatpush1.xpose.msra.mxu0 0.0
    %469 = vmatprep.subr.mxu0 0.0
    %470 = vmatpush1.xpose.msra.mxu0 0.0
    %471 = vmatprep.subr.mxu0 0.0
    %472 = vmatpush1.xpose.msra.mxu0 0.0
    %473 = vmatprep.subr.mxu0 0.0
    %474 = vmatpush1.xpose.msra.mxu0 0.0
    %475 = vmatprep.subr.mxu0 0.0
    %476 = vmatpush1.xpose.msra.mxu0 0.0
    %477 = vmatprep.subr.mxu0 0.0
    %478 = vmatpush1.xpose.msra.mxu0 0.0
    %479 = vmatprep.subr.mxu0 0.0
    %480 = vmatpush1.xpose.msra.mxu0 0.0
    %481 = vmatprep.subr.mxu0 0.0
    %482 = vmatpush1.xpose.msra.mxu0 0.0
    %483 = vmatprep.subr.mxu0 0.0
    %484 = vmatpush1.xpose.msra.mxu0 0.0
    %485 = vmatprep.subr.mxu0 0.0
    %486 = vmatpush1.xpose.msra.mxu0 0.0
    %487 = vmatprep.subr.mxu0 0.0
    %488 = vmatpush1.xpose.msra.mxu0 0.0
    %489 = vmatprep.subr.mxu0 0.0
    %490 = vmatpush1.xpose.msra.mxu0 0.0
    %491 = vmatprep.mubr.f32.mxu0 0.0
    %492 = vmatmul.mubr.f32.gmra.mrb[0].mxu0 %v422
    %v493 = vpop.f32.mrb[0].mxu0
    %v494 = vadd.f32 0.0, %v493
    %v495 = vpop.f32.mrb[0].mxu0
    %496 = vdwg.mxu0
    %v498 = vsel %vm420, %v411, 0
    %v501 = vsel %vm420, %v417, 0
    %503 = vmatprep.subr.mxu0 0.0
    %504 = vmatpush1.xpose.msra.mxu0 %v501
    %505 = vmatprep.subr.mxu0 0.0
    %506 = vmatpush1.xpose.msra.mxu0 0.0
    %507 = vmatprep.subr.mxu0 0.0
    %508 = vmatpush1.xpose.msra.mxu0 0.0
    %509 = vmatprep.subr.mxu0 0.0
    %510 = vmatpush1.xpose.msra.mxu0 0.0
    %511 = vmatprep.subr.mxu0 0.0
    %512 = vmatpush1.xpose.msra.mxu0 0.0
    %513 = vmatprep.subr.mxu0 0.0
    %514 = vmatpush1.xpose.msra.mxu0 0.0
    %515 = vmatprep.subr.mxu0 0.0
    %516 = vmatpush1.xpose.msra.mxu0 0.0
    %517 = vmatprep.subr.mxu0 0.0
    %518 = vmatpush1.xpose.msra.mxu0 0.0
    %519 = vmatprep.subr.mxu0 0.0
    %520 = vmatpush1.xpose.msra.mxu0 0.0
    %521 = vmatprep.subr.mxu0 0.0
    %522 = vmatpush1.xpose.msra.mxu0 0.0
    %523 = vmatprep.subr.mxu0 0.0
    %524 = vmatpush1.xpose.msra.mxu0 0.0
    %525 = vmatprep.subr.mxu0 0.0
    %526 = vmatpush1.xpose.msra.mxu0 0.0
    %527 = vmatprep.subr.mxu0 0.0
    %528 = vmatpush1.xpose.msra.mxu0 0.0
    %529 = vmatprep.subr.mxu0 0.0
    %530 = vmatpush1.xpose.msra.mxu0 0.0
    %531 = vmatprep.subr.mxu0 0.0
    %532 = vmatpush1.xpose.msra.mxu0 0.0
    %533 = vmatprep.subr.mxu0 0.0
    %534 = vmatpush1.xpose.msra.mxu0 0.0
    %535 = vmatprep.subr.mxu0 0.0
    %536 = vmatpush1.xpose.msra.mxu0 0.0
    %537 = vmatprep.subr.mxu0 0.0
    %538 = vmatpush1.xpose.msra.mxu0 0.0
    %539 = vmatprep.subr.mxu0 0.0
    %540 = vmatpush1.xpose.msra.mxu0 0.0
    %541 = vmatprep.subr.mxu0 0.0
    %542 = vmatpush1.xpose.msra.mxu0 0.0
    %543 = vmatprep.subr.mxu0 0.0
    %544 = vmatpush1.xpose.msra.mxu0 0.0
    %545 = vmatprep.subr.mxu0 0.0
    %546 = vmatpush1.xpose.msra.mxu0 0.0
    %547 = vmatprep.subr.mxu0 0.0
    %548 = vmatpush1.xpose.msra.mxu0 0.0
    %549 = vmatprep.subr.mxu0 0.0
    %550 = vmatpush1.xpose.msra.mxu0 0.0
    %551 = vmatprep.subr.mxu0 0.0
    %552 = vmatpush1.xpose.msra.mxu0 0.0
    %553 = vmatprep.subr.mxu0 0.0
    %554 = vmatpush1.xpose.msra.mxu0 0.0
    %555 = vmatprep.subr.mxu0 0.0
    %556 = vmatpush1.xpose.msra.mxu0 0.0
    %557 = vmatprep.subr.mxu0 0.0
    %558 = vmatpush1.xpose.msra.mxu0 0.0
    %559 = vmatprep.subr.mxu0 0.0
    %560 = vmatpush1.xpose.msra.mxu0 0.0
    %561 = vmatprep.subr.mxu0 0.0
    %562 = vmatpush1.xpose.msra.mxu0 0.0
    %563 = vmatprep.subr.mxu0 0.0
    %564 = vmatpush1.xpose.msra.mxu0 0.0
    %565 = vmatprep.subr.mxu0 0.0
    %566 = vmatpush1.xpose.msra.mxu0 0.0
    %567 = vmatprep.mubr.f32.mxu0 0.0
    %568 = vmatmul.mubr.f32.gmra.mrb[0].mxu0 %v498
    %v569 = vpop.f32.mrb[0].mxu0
    %v570 = vadd.f32 0.0, %v569
    %v571 = vpop.f32.mrb[0].mxu0
    %572 = vdwg.mxu0
    %v573 = vmul.f32 %v494, 0.35355338
    %v574 = vmul.f32 %v570, 0.35355338
    %v575 = vadd.f32 %v573, %v415
    %v576 = vadd.f32 %v574, %v415
    %v577 = vsel %vm420, %v575, -inf
    %578 = vmax.xlane.f32.xlu0 %v577
    %v579 = vpop.xlane.xlu0 %578
    %v580 = vsel %vm420, %v576, -inf
    %581 = vmax.xlane.f32.xlu0 %v580
    %v582 = vpop.xlane.xlu0 %581
    %v583 = vsub.f32 %v575, %v579
    %v584 = vsub.f32 %v576, %v582
    %v585 = vmul.f32 %v583, 1.442695
    %v586 = vpow.pop %v585
    %v587 = vmul.f32 %v584, 1.442695
    %v588 = vpow.pop %v587
    %v589 = vsel %vm420, %v586, 0.0
    %590 = vadd.xlane.f32.xlu0 %v589
    %v591 = vpop.xlane.xlu0 %590
    %v592 = vsel %vm420, %v588, 0.0
    %593 = vadd.xlane.f32.xlu0 %v592
    %v594 = vpop.xlane.xlu0 %593
    %v595 = vrcp.pop %v591
    %v596 = vrcp.pop %v594
    %v598 = vsel %vm420, %v586, 0
    %600 = vmatprep.subr.mxu0 0.0
    %601 = vmatpush1.msra.mxu0 %v418
    %602 = vmatprep.subr.mxu0 0.0
    %603 = vmatpush1.msra.mxu0 0.0
    %604 = vmatprep.subr.mxu0 0.0
    %605 = vmatpush1.msra.mxu0 0.0
    %606 = vmatprep.subr.mxu0 0.0
    %607 = vmatpush1.msra.mxu0 0.0
    %608 = vmatprep.subr.mxu0 0.0
    %609 = vmatpush1.msra.mxu0 0.0
    %610 = vmatprep.subr.mxu0 0.0
    %611 = vmatpush1.msra.mxu0 0.0
    %612 = vmatprep.subr.mxu0 0.0
    %613 = vmatpush1.msra.mxu0 0.0
    %614 = vmatprep.subr.mxu0 0.0
    %615 = vmatpush1.msra.mxu0 0.0
    %616 = vmatprep.subr.mxu0 0.0
    %617 = vmatpush1.msra.mxu0 0.0
    %618 = vmatprep.subr.mxu0 0.0
    %619 = vmatpush1.msra.mxu0 0.0
    %620 = vmatprep.subr.mxu0 0.0
    %621 = vmatpush1.msra.mxu0 0.0
    %622 = vmatprep.subr.mxu0 0.0
    %623 = vmatpush1.msra.mxu0 0.0
    %624 = vmatprep.subr.mxu0 0.0
    %625 = vmatpush1.msra.mxu0 0.0
    %626 = vmatprep.subr.mxu0 0.0
    %627 = vmatpush1.msra.mxu0 0.0
    %628 = vmatprep.subr.mxu0 0.0
    %629 = vmatpush1.msra.mxu0 0.0
    %630 = vmatprep.subr.mxu0 0.0
    %631 = vmatpush1.msra.mxu0 0.0
    %632 = vmatprep.subr.mxu0 0.0
    %633 = vmatpush1.msra.mxu0 0.0
    %634 = vmatprep.subr.mxu0 0.0
    %635 = vmatpush1.msra.mxu0 0.0
    %636 = vmatprep.subr.mxu0 0.0
    %637 = vmatpush1.msra.mxu0 0.0
    %638 = vmatprep.subr.mxu0 0.0
    %639 = vmatpush1.msra.mxu0 0.0
    %640 = vmatprep.subr.mxu0 0.0
    %641 = vmatpush1.msra.mxu0 0.0
    %642 = vmatprep.subr.mxu0 0.0
    %643 = vmatpush1.msra.mxu0 0.0
    %644 = vmatprep.subr.mxu0 0.0
    %645 = vmatpush1.msra.mxu0 0.0
    %646 = vmatprep.subr.mxu0 0.0
    %647 = vmatpush1.msra.mxu0 0.0
    %648 = vmatprep.subr.mxu0 0.0
    %649 = vmatpush1.msra.mxu0 0.0
    %650 = vmatprep.subr.mxu0 0.0
    %651 = vmatpush1.msra.mxu0 0.0
    %652 = vmatprep.subr.mxu0 0.0
    %653 = vmatpush1.msra.mxu0 0.0
    %654 = vmatprep.subr.mxu0 0.0
    %655 = vmatpush1.msra.mxu0 0.0
    %656 = vmatprep.subr.mxu0 0.0
    %657 = vmatpush1.msra.mxu0 0.0
    %658 = vmatprep.subr.mxu0 0.0
    %659 = vmatpush1.msra.mxu0 0.0
    %660 = vmatprep.subr.mxu0 0.0
    %661 = vmatpush1.msra.mxu0 0.0
    %662 = vmatprep.subr.mxu0 0.0
    %663 = vmatpush1.msra.mxu0 0.0
    %664 = vmatprep.mubr.f32.mxu0 0.0
    %665 = vmatmul.mubr.f32.gmra.mrb[0].mxu0 %v598
    %v666 = vpop.f32.mrb[0].mxu0
    %v667 = vadd.f32 0.0, %v666
    %v668 = vpop.f32.mrb[0].mxu0
    %669 = vdwg.mxu0
    %v671 = vsel %vm420, %v588, 0
    %673 = vmatprep.subr.mxu0 0.0
    %674 = vmatpush1.msra.mxu0 %v419
    %675 = vmatprep.subr.mxu0 0.0
    %676 = vmatpush1.msra.mxu0 0.0
    %677 = vmatprep.subr.mxu0 0.0
    %678 = vmatpush1.msra.mxu0 0.0
    %679 = vmatprep.subr.mxu0 0.0
    %680 = vmatpush1.msra.mxu0 0.0
    %681 = vmatprep.subr.mxu0 0.0
    %682 = vmatpush1.msra.mxu0 0.0
    %683 = vmatprep.subr.mxu0 0.0
    %684 = vmatpush1.msra.mxu0 0.0
    %685 = vmatprep.subr.mxu0 0.0
    %686 = vmatpush1.msra.mxu0 0.0
    %687 = vmatprep.subr.mxu0 0.0
    %688 = vmatpush1.msra.mxu0 0.0
    %689 = vmatprep.subr.mxu0 0.0
    %690 = vmatpush1.msra.mxu0 0.0
    %691 = vmatprep.subr.mxu0 0.0
    %692 = vmatpush1.msra.mxu0 0.0
    %693 = vmatprep.subr.mxu0 0.0
    %694 = vmatpush1.msra.mxu0 0.0
    %695 = vmatprep.subr.mxu0 0.0
    %696 = vmatpush1.msra.mxu0 0.0
    %697 = vmatprep.subr.mxu0 0.0
    %698 = vmatpush1.msra.mxu0 0.0
    %699 = vmatprep.subr.mxu0 0.0
    %700 = vmatpush1.msra.mxu0 0.0
    %701 = vmatprep.subr.mxu0 0.0
    %702 = vmatpush1.msra.mxu0 0.0
    %703 = vmatprep.subr.mxu0 0.0
    %704 = vmatpush1.msra.mxu0 0.0
    %705 = vmatprep.subr.mxu0 0.0
    %706 = vmatpush1.msra.mxu0 0.0
    %707 = vmatprep.subr.mxu0 0.0
    %708 = vmatpush1.msra.mxu0 0.0
    %709 = vmatprep.subr.mxu0 0.0
    %710 = vmatpush1.msra.mxu0 0.0
    %711 = vmatprep.subr.mxu0 0.0
    %712 = vmatpush1.msra.mxu0 0.0
    %713 = vmatprep.subr.mxu0 0.0
    %714 = vmatpush1.msra.mxu0 0.0
    %715 = vmatprep.subr.mxu0 0.0
    %716 = vmatpush1.msra.mxu0 0.0
    %717 = vmatprep.subr.mxu0 0.0
    %718 = vmatpush1.msra.mxu0 0.0
    %719 = vmatprep.subr.mxu0 0.0
    %720 = vmatpush1.msra.mxu0 0.0
    %721 = vmatprep.subr.mxu0 0.0
    %722 = vmatpush1.msra.mxu0 0.0
    %723 = vmatprep.subr.mxu0 0.0
    %724 = vmatpush1.msra.mxu0 0.0
    %725 = vmatprep.subr.mxu0 0.0
    %726 = vmatpush1.msra.mxu0 0.0
    %727 = vmatprep.subr.mxu0 0.0
    %728 = vmatpush1.msra.mxu0 0.0
    %729 = vmatprep.subr.mxu0 0.0
    %730 = vmatpush1.msra.mxu0 0.0
    %731 = vmatprep.subr.mxu0 0.0
    %732 = vmatpush1.msra.mxu0 0.0
    %733 = vmatprep.subr.mxu0 0.0
    %734 = vmatpush1.msra.mxu0 0.0
    %735 = vmatprep.subr.mxu0 0.0
    %736 = vmatpush1.msra.mxu0 0.0
    %737 = vmatprep.mubr.f32.mxu0 0.0
    %738 = vmatmul.mubr.f32.gmra.mrb[0].mxu0 %v671
    %v739 = vpop.f32.mrb[0].mxu0
    %v740 = vadd.f32 0.0, %v739
    %v741 = vpop.f32.mrb[0].mxu0
    %742 = vdwg.mxu0
    %v743 = vmul.f32 %v667, %v595
    %v744 = vmul.f32 %v740, %v596
    %745 = vst.msk [vmem:[#allocation4] sm:$0xff] %vm420, %v743
    %746 = vst.msk [vmem:[#allocation4 + $0x8] sm:$0xff] %vm420, %v744
    %v747 = vld [vmem:[#allocation2] sm:$0xff]
    %v748 = vld [vmem:[#allocation2 + $0x8] sm:$0xff]
    %v749 = vld [vmem:[#allocation3] sm:$0xff]
    %v750 = vld [vmem:[#allocation3 + $0x8] sm:$0xff]
    %751 = vrot.lane.b32.xlu0 %v406, 120
    %v752 = vpop.permute.xlu0 %751
    %754 = vrot.lane.b32.xlu0 %v747, 120
    %v755 = vpop.permute.xlu0 %754
    %v756 = vsel %vm420, %v752, 0
    %v758 = vsel %vm420, %v755, 0
    %760 = vmatprep.subr.mxu0 0.0
    %761 = vmatpush1.xpose.msra.mxu0 %v758
    %762 = vmatprep.subr.mxu0 0.0
    %763 = vmatpush1.xpose.msra.mxu0 0.0
    %764 = vmatprep.subr.mxu0 0.0
    %765 = vmatpush1.xpose.msra.mxu0 0.0
    %766 = vmatprep.subr.mxu0 0.0
    %767 = vmatpush1.xpose.msra.mxu0 0.0
    %768 = vmatprep.subr.mxu0 0.0
    %769 = vmatpush1.xpose.msra.mxu0 0.0
    %770 = vmatprep.subr.mxu0 0.0
    %771 = vmatpush1.xpose.msra.mxu0 0.0
    %772 = vmatprep.subr.mxu0 0.0
    %773 = vmatpush1.xpose.msra.mxu0 0.0
    %774 = vmatprep.subr.mxu0 0.0
    %775 = vmatpush1.xpose.msra.mxu0 0.0
    %776 = vmatprep.subr.mxu0 0.0
    %777 = vmatpush1.xpose.msra.mxu0 0.0
    %778 = vmatprep.subr.mxu0 0.0
    %779 = vmatpush1.xpose.msra.mxu0 0.0
    %780 = vmatprep.subr.mxu0 0.0
    %781 = vmatpush1.xpose.msra.mxu0 0.0
    %782 = vmatprep.subr.mxu0 0.0
    %783 = vmatpush1.xpose.msra.mxu0 0.0
    %784 = vmatprep.subr.mxu0 0.0
    %785 = vmatpush1.xpose.msra.mxu0 0.0
    %786 = vmatprep.subr.mxu0 0.0
    %787 = vmatpush1.xpose.msra.mxu0 0.0
    %788 = vmatprep.subr.mxu0 0.0
    %789 = vmatpush1.xpose.msra.mxu0 0.0
    %790 = vmatprep.subr.mxu0 0.0
    %791 = vmatpush1.xpose.msra.mxu0 0.0
    %792 = vmatprep.subr.mxu0 0.0
    %793 = vmatpush1.xpose.msra.mxu0 0.0
    %794 = vmatprep.subr.mxu0 0.0
    %795 = vmatpush1.xpose.msra.mxu0 0.0
    %796 = vmatprep.subr.mxu0 0.0
    %797 = vmatpush1.xpose.msra.mxu0 0.0
    %798 = vmatprep.subr.mxu0 0.0
    %799 = vmatpush1.xpose.msra.mxu0 0.0
    %800 = vmatprep.subr.mxu0 0.0
    %801 = vmatpush1.xpose.msra.mxu0 0.0
    %802 = vmatprep.subr.mxu0 0.0
    %803 = vmatpush1.xpose.msra.mxu0 0.0
    %804 = vmatprep.subr.mxu0 0.0
    %805 = vmatpush1.xpose.msra.mxu0 0.0
    %806 = vmatprep.subr.mxu0 0.0
    %807 = vmatpush1.xpose.msra.mxu0 0.0
    %808 = vmatprep.subr.mxu0 0.0
    %809 = vmatpush1.xpose.msra.mxu0 0.0
    %810 = vmatprep.subr.mxu0 0.0
    %811 = vmatpush1.xpose.msra.mxu0 0.0
    %812 = vmatprep.subr.mxu0 0.0
    %813 = vmatpush1.xpose.msra.mxu0 0.0
    %814 = vmatprep.subr.mxu0 0.0
    %815 = vmatpush1.xpose.msra.mxu0 0.0
    %816 = vmatprep.subr.mxu0 0.0
    %817 = vmatpush1.xpose.msra.mxu0 0.0
    %818 = vmatprep.subr.mxu0 0.0
    %819 = vmatpush1.xpose.msra.mxu0 0.0
    %820 = vmatprep.subr.mxu0 0.0
    %821 = vmatpush1.xpose.msra.mxu0 0.0
    %822 = vmatprep.subr.mxu0 0.0
    %823 = vmatpush1.xpose.msra.mxu0 0.0
    %824 = vmatprep.mubr.f32.mxu0 0.0
    %825 = vmatmul.mubr.f32.gmra.mrb[0].mxu0 %v756
    %v826 = vpop.f32.mrb[0].mxu0
    %v827 = vadd.f32 0.0, %v826
    %v828 = vpop.f32.mrb[0].mxu0
    %829 = vdwg.mxu0
    %830 = vrot.lane.b32.xlu0 %v411, 120
    %v831 = vpop.permute.xlu0 %830
    %833 = vrot.lane.b32.xlu0 %v748, 120
    %v834 = vpop.permute.xlu0 %833
    %v835 = vsel %vm420, %v831, 0
    %v837 = vsel %vm420, %v834, 0
    %839 = vmatprep.subr.mxu0 0.0
    %840 = vmatpush1.xpose.msra.mxu0 %v837
    %841 = vmatprep.subr.mxu0 0.0
    %842 = vmatpush1.xpose.msra.mxu0 0.0
    %843 = vmatprep.subr.mxu0 0.0
    %844 = vmatpush1.xpose.msra.mxu0 0.0
    %845 = vmatprep.subr.mxu0 0.0
    %846 = vmatpush1.xpose.msra.mxu0 0.0
    %847 = vmatprep.subr.mxu0 0.0
    %848 = vmatpush1.xpose.msra.mxu0 0.0
    %849 = vmatprep.subr.mxu0 0.0
    %850 = vmatpush1.xpose.msra.mxu0 0.0
    %851 = vmatprep.subr.mxu0 0.0
    %852 = vmatpush1.xpose.msra.mxu0 0.0
    %853 = vmatprep.subr.mxu0 0.0
    %854 = vmatpush1.xpose.msra.mxu0 0.0
    %855 = vmatprep.subr.mxu0 0.0
    %856 = vmatpush1.xpose.msra.mxu0 0.0
    %857 = vmatprep.subr.mxu0 0.0
    %858 = vmatpush1.xpose.msra.mxu0 0.0
    %859 = vmatprep.subr.mxu0 0.0
    %860 = vmatpush1.xpose.msra.mxu0 0.0
    %861 = vmatprep.subr.mxu0 0.0
    %862 = vmatpush1.xpose.msra.mxu0 0.0
    %863 = vmatprep.subr.mxu0 0.0
    %864 = vmatpush1.xpose.msra.mxu0 0.0
    %865 = vmatprep.subr.mxu0 0.0
    %866 = vmatpush1.xpose.msra.mxu0 0.0
    %867 = vmatprep.subr.mxu0 0.0
    %868 = vmatpush1.xpose.msra.mxu0 0.0
    %869 = vmatprep.subr.mxu0 0.0
    %870 = vmatpush1.xpose.msra.mxu0 0.0
    %871 = vmatprep.subr.mxu0 0.0
    %872 = vmatpush1.xpose.msra.mxu0 0.0
    %873 = vmatprep.subr.mxu0 0.0
    %874 = vmatpush1.xpose.msra.mxu0 0.0
    %875 = vmatprep.subr.mxu0 0.0
    %876 = vmatpush1.xpose.msra.mxu0 0.0
    %877 = vmatprep.subr.mxu0 0.0
    %878 = vmatpush1.xpose.msra.mxu0 0.0
    %879 = vmatprep.subr.mxu0 0.0
    %880 = vmatpush1.xpose.msra.mxu0 0.0
    %881 = vmatprep.subr.mxu0 0.0
    %882 = vmatpush1.xpose.msra.mxu0 0.0
    %883 = vmatprep.subr.mxu0 0.0
    %884 = vmatpush1.xpose.msra.mxu0 0.0
    %885 = vmatprep.subr.mxu0 0.0
    %886 = vmatpush1.xpose.msra.mxu0 0.0
    %887 = vmatprep.subr.mxu0 0.0
    %888 = vmatpush1.xpose.msra.mxu0 0.0
    %889 = vmatprep.subr.mxu0 0.0
    %890 = vmatpush1.xpose.msra.mxu0 0.0
    %891 = vmatprep.subr.mxu0 0.0
    %892 = vmatpush1.xpose.msra.mxu0 0.0
    %893 = vmatprep.subr.mxu0 0.0
    %894 = vmatpush1.xpose.msra.mxu0 0.0
    %895 = vmatprep.subr.mxu0 0.0
    %896 = vmatpush1.xpose.msra.mxu0 0.0
    %897 = vmatprep.subr.mxu0 0.0
    %898 = vmatpush1.xpose.msra.mxu0 0.0
    %899 = vmatprep.subr.mxu0 0.0
    %900 = vmatpush1.xpose.msra.mxu0 0.0
    %901 = vmatprep.subr.mxu0 0.0
    %902 = vmatpush1.xpose.msra.mxu0 0.0
    %903 = vmatprep.mubr.f32.mxu0 0.0
    %904 = vmatmul.mubr.f32.gmra.mrb[0].mxu0 %v835
    %v905 = vpop.f32.mrb[0].mxu0
    %v906 = vadd.f32 0.0, %v905
    %v907 = vpop.f32.mrb[0].mxu0
    %908 = vdwg.mxu0
    %v909 = vmul.f32 %v827, 0.35355338
    %v910 = vmul.f32 %v906, 0.35355338
    %v911 = vadd.f32 %v909, %v415
    %v912 = vadd.f32 %v910, %v415
    %v913 = vsel %vm420, %v911, -inf
    %914 = vmax.xlane.f32.xlu0 %v913
    %v915 = vpop.xlane.xlu0 %914
    %v916 = vsel %vm420, %v912, -inf
    %917 = vmax.xlane.f32.xlu0 %v916
    %v918 = vpop.xlane.xlu0 %917
    %v919 = vsub.f32 %v911, %v915
    %v920 = vsub.f32 %v912, %v918
    %v921 = vmul.f32 %v919, 1.442695
    %v922 = vpow.pop %v921
    %v923 = vmul.f32 %v920, 1.442695
    %v924 = vpow.pop %v923
    %v925 = vsel %vm420, %v922, 0.0
    %926 = vadd.xlane.f32.xlu0 %v925
    %v927 = vpop.xlane.xlu0 %926
    %v928 = vsel %vm420, %v924, 0.0
    %929 = vadd.xlane.f32.xlu0 %v928
    %v930 = vpop.xlane.xlu0 %929
    %v931 = vrcp.pop %v927
    %v932 = vrcp.pop %v930
    %934 = vrot.lane.b32.xlu0 %v749, 120
    %v935 = vpop.permute.xlu0 %934
    %v938 = vsel %vm420, %v922, 0
    %940 = vmatprep.subr.mxu0 0.0
    %941 = vmatpush1.msra.mxu0 %v935
    %942 = vmatprep.subr.mxu0 0.0
    %943 = vmatpush1.msra.mxu0 0.0
    %944 = vmatprep.subr.mxu0 0.0
    %945 = vmatpush1.msra.mxu0 0.0
    %946 = vmatprep.subr.mxu0 0.0
    %947 = vmatpush1.msra.mxu0 0.0
    %948 = vmatprep.subr.mxu0 0.0
    %949 = vmatpush1.msra.mxu0 0.0
    %950 = vmatprep.subr.mxu0 0.0
    %951 = vmatpush1.msra.mxu0 0.0
    %952 = vmatprep.subr.mxu0 0.0
    %953 = vmatpush1.msra.mxu0 0.0
    %954 = vmatprep.subr.mxu0 0.0
    %955 = vmatpush1.msra.mxu0 0.0
    %956 = vmatprep.subr.mxu0 0.0
    %957 = vmatpush1.msra.mxu0 0.0
    %958 = vmatprep.subr.mxu0 0.0
    %959 = vmatpush1.msra.mxu0 0.0
    %960 = vmatprep.subr.mxu0 0.0
    %961 = vmatpush1.msra.mxu0 0.0
    %962 = vmatprep.subr.mxu0 0.0
    %963 = vmatpush1.msra.mxu0 0.0
    %964 = vmatprep.subr.mxu0 0.0
    %965 = vmatpush1.msra.mxu0 0.0
    %966 = vmatprep.subr.mxu0 0.0
    %967 = vmatpush1.msra.mxu0 0.0
    %968 = vmatprep.subr.mxu0 0.0
    %969 = vmatpush1.msra.mxu0 0.0
    %970 = vmatprep.subr.mxu0 0.0
    %971 = vmatpush1.msra.mxu0 0.0
    %972 = vmatprep.subr.mxu0 0.0
    %973 = vmatpush1.msra.mxu0 0.0
    %974 = vmatprep.subr.mxu0 0.0
    %975 = vmatpush1.msra.mxu0 0.0
    %976 = vmatprep.subr.mxu0 0.0
    %977 = vmatpush1.msra.mxu0 0.0
    %978 = vmatprep.subr.mxu0 0.0
    %979 = vmatpush1.msra.mxu0 0.0
    %980 = vmatprep.subr.mxu0 0.0
    %981 = vmatpush1.msra.mxu0 0.0
    %982 = vmatprep.subr.mxu0 0.0
    %983 = vmatpush1.msra.mxu0 0.0
    %984 = vmatprep.subr.mxu0 0.0
    %985 = vmatpush1.msra.mxu0 0.0
    %986 = vmatprep.subr.mxu0 0.0
    %987 = vmatpush1.msra.mxu0 0.0
    %988 = vmatprep.subr.mxu0 0.0
    %989 = vmatpush1.msra.mxu0 0.0
    %990 = vmatprep.subr.mxu0 0.0
    %991 = vmatpush1.msra.mxu0 0.0
    %992 = vmatprep.subr.mxu0 0.0
    %993 = vmatpush1.msra.mxu0 0.0
    %994 = vmatprep.subr.mxu0 0.0
    %995 = vmatpush1.msra.mxu0 0.0
    %996 = vmatprep.subr.mxu0 0.0
    %997 = vmatpush1.msra.mxu0 0.0
    %998 = vmatprep.subr.mxu0 0.0
    %999 = vmatpush1.msra.mxu0 0.0
    %1000 = vmatprep.subr.mxu0 0.0
    %1001 = vmatpush1.msra.mxu0 0.0
    %1002 = vmatprep.subr.mxu0 0.0
    %1003 = vmatpush1.msra.mxu0 0.0
    %1004 = vmatprep.mubr.f32.mxu0 0.0
    %1005 = vmatmul.mubr.f32.gmra.mrb[0].mxu0 %v938
    %v1006 = vpop.f32.mrb[0].mxu0
    %v1007 = vadd.f32 0.0, %v1006
    %v1008 = vpop.f32.mrb[0].mxu0
    %1009 = vdwg.mxu0
    %1011 = vrot.lane.b32.xlu0 %v750, 120
    %v1012 = vpop.permute.xlu0 %1011
    %v1015 = vsel %vm420, %v924, 0
    %1017 = vmatprep.subr.mxu0 0.0
    %1018 = vmatpush1.msra.mxu0 %v1012
    %1019 = vmatprep.subr.mxu0 0.0
    %1020 = vmatpush1.msra.mxu0 0.0
    %1021 = vmatprep.subr.mxu0 0.0
    %1022 = vmatpush1.msra.mxu0 0.0
    %1023 = vmatprep.subr.mxu0 0.0
    %1024 = vmatpush1.msra.mxu0 0.0
    %1025 = vmatprep.subr.mxu0 0.0
    %1026 = vmatpush1.msra.mxu0 0.0
    %1027 = vmatprep.subr.mxu0 0.0
    %1028 = vmatpush1.msra.mxu0 0.0
    %1029 = vmatprep.subr.mxu0 0.0
    %1030 = vmatpush1.msra.mxu0 0.0
    %1031 = vmatprep.subr.mxu0 0.0
    %1032 = vmatpush1.msra.mxu0 0.0
    %1033 = vmatprep.subr.mxu0 0.0
    %1034 = vmatpush1.msra.mxu0 0.0
    %1035 = vmatprep.subr.mxu0 0.0
    %1036 = vmatpush1.msra.mxu0 0.0
    %1037 = vmatprep.subr.mxu0 0.0
    %1038 = vmatpush1.msra.mxu0 0.0
    %1039 = vmatprep.subr.mxu0 0.0
    %1040 = vmatpush1.msra.mxu0 0.0
    %1041 = vmatprep.subr.mxu0 0.0
    %1042 = vmatpush1.msra.mxu0 0.0
    %1043 = vmatprep.subr.mxu0 0.0
    %1044 = vmatpush1.msra.mxu0 0.0
    %1045 = vmatprep.subr.mxu0 0.0
    %1046 = vmatpush1.msra.mxu0 0.0
    %1047 = vmatprep.subr.mxu0 0.0
    %1048 = vmatpush1.msra.mxu0 0.0
    %1049 = vmatprep.subr.mxu0 0.0
    %1050 = vmatpush1.msra.mxu0 0.0
    %1051 = vmatprep.subr.mxu0 0.0
    %1052 = vmatpush1.msra.mxu0 0.0
    %1053 = vmatprep.subr.mxu0 0.0
    %1054 = vmatpush1.msra.mxu0 0.0
    %1055 = vmatprep.subr.mxu0 0.0
    %1056 = vmatpush1.msra.mxu0 0.0
    %1057 = vmatprep.subr.mxu0 0.0
    %1058 = vmatpush1.msra.mxu0 0.0
    %1059 = vmatprep.subr.mxu0 0.0
    %1060 = vmatpush1.msra.mxu0 0.0
    %1061 = vmatprep.subr.mxu0 0.0
    %1062 = vmatpush1.msra.mxu0 0.0
    %1063 = vmatprep.subr.mxu0 0.0
    %1064 = vmatpush1.msra.mxu0 0.0
    %1065 = vmatprep.subr.mxu0 0.0
    %1066 = vmatpush1.msra.mxu0 0.0
    %1067 = vmatprep.subr.mxu0 0.0
    %1068 = vmatpush1.msra.mxu0 0.0
    %1069 = vmatprep.subr.mxu0 0.0
    %1070 = vmatpush1.msra.mxu0 0.0
    %1071 = vmatprep.subr.mxu0 0.0
    %1072 = vmatpush1.msra.mxu0 0.0
    %1073 = vmatprep.subr.mxu0 0.0
    %1074 = vmatpush1.msra.mxu0 0.0
    %1075 = vmatprep.subr.mxu0 0.0
    %1076 = vmatpush1.msra.mxu0 0.0
    %1077 = vmatprep.subr.mxu0 0.0
    %1078 = vmatpush1.msra.mxu0 0.0
    %1079 = vmatprep.subr.mxu0 0.0
    %1080 = vmatpush1.msra.mxu0 0.0
    %1081 = vmatprep.mubr.f32.mxu0 0.0
    %1082 = vmatmul.mubr.f32.gmra.mrb[0].mxu0 %v1015
    %v1083 = vpop.f32.mrb[0].mxu0
    %v1084 = vadd.f32 0.0, %v1083
    %v1085 = vpop.f32.mrb[0].mxu0
    %1086 = vdwg.mxu0
    %v1087 = vmul.f32 %v1007, %v931
    %v1088 = vmul.f32 %v1084, %v932
    %1091 = vrot.lane.b32.xlu0 %v1087, 8
    %v1092 = vpop.permute.xlu0 %1091
    %1093 = vrot.lane.b32.xlu0 %v1088, 8
    %v1094 = vpop.permute.xlu0 %1093
    %vm1097 = vcmask 130112
    %1098 = vst.msk [vmem:[#allocation4] sm:$0xff] %vm1097, %v1092
    %1099 = vst.msk [vmem:[#allocation4 + $0x8] sm:$0xff] %vm1097, %v1094
    %v1100 = vld [vmem:[#allocation2] sm:$0xff]
    %v1101 = vld [vmem:[#allocation2 + $0x8] sm:$0xff]
    %v1102 = vld [vmem:[#allocation3] sm:$0xff]
    %v1103 = vld [vmem:[#allocation3 + $0x8] sm:$0xff]
    %1104 = vrot.lane.b32.xlu0 %v406, 112
    %v1105 = vpop.permute.xlu0 %1104
    %1107 = vrot.lane.b32.xlu0 %v1100, 112
    %v1108 = vpop.permute.xlu0 %1107
    %v1109 = vsel %vm420, %v1105, 0
    %v1111 = vsel %vm420, %v1108, 0
    %1113 = vmatprep.subr.mxu0 0.0
    %1114 = vmatpush1.xpose.msra.mxu0 %v1111
    %1115 = vmatprep.subr.mxu0 0.0
    %1116 = vmatpush1.xpose.msra.mxu0 0.0
    %1117 = vmatprep.subr.mxu0 0.0
    %1118 = vmatpush1.xpose.msra.mxu0 0.0
    %1119 = vmatprep.subr.mxu0 0.0
    %1120 = vmatpush1.xpose.msra.mxu0 0.0
    %1121 = vmatprep.subr.mxu0 0.0
    %1122 = vmatpush1.xpose.msra.mxu0 0.0
    %1123 = vmatprep.subr.mxu0 0.0
    %1124 = vmatpush1.xpose.msra.mxu0 0.0
    %1125 = vmatprep.subr.mxu0 0.0
    %1126 = vmatpush1.xpose.msra.mxu0 0.0
    %1127 = vmatprep.subr.mxu0 0.0
    %1128 = vmatpush1.xpose.msra.mxu0 0.0
    %1129 = vmatprep.subr.mxu0 0.0
    %1130 = vmatpush1.xpose.msra.mxu0 0.0
    %1131 = vmatprep.subr.mxu0 0.0
    %1132 = vmatpush1.xpose.msra.mxu0 0.0
    %1133 = vmatprep.subr.mxu0 0.0
    %1134 = vmatpush1.xpose.msra.mxu0 0.0
    %1135 = vmatprep.subr.mxu0 0.0
    %1136 = vmatpush1.xpose.msra.mxu0 0.0
    %1137 = vmatprep.subr.mxu0 0.0
    %1138 = vmatpush1.xpose.msra.mxu0 0.0
    %1139 = vmatprep.subr.mxu0 0.0
    %1140 = vmatpush1.xpose.msra.mxu0 0.0
    %1141 = vmatprep.subr.mxu0 0.0
    %1142 = vmatpush1.xpose.msra.mxu0 0.0
    %1143 = vmatprep.subr.mxu0 0.0
    %1144 = vmatpush1.xpose.msra.mxu0 0.0
    %1145 = vmatprep.subr.mxu0 0.0
    %1146 = vmatpush1.xpose.msra.mxu0 0.0
    %1147 = vmatprep.subr.mxu0 0.0
    %1148 = vmatpush1.xpose.msra.mxu0 0.0
    %1149 = vmatprep.subr.mxu0 0.0
    %1150 = vmatpush1.xpose.msra.mxu0 0.0
    %1151 = vmatprep.subr.mxu0 0.0
    %1152 = vmatpush1.xpose.msra.mxu0 0.0
    %1153 = vmatprep.subr.mxu0 0.0
    %1154 = vmatpush1.xpose.msra.mxu0 0.0
    %1155 = vmatprep.subr.mxu0 0.0
    %1156 = vmatpush1.xpose.msra.mxu0 0.0
    %1157 = vmatprep.subr.mxu0 0.0
    %1158 = vmatpush1.xpose.msra.mxu0 0.0
    %1159 = vmatprep.subr.mxu0 0.0
    %1160 = vmatpush1.xpose.msra.mxu0 0.0
    %1161 = vmatprep.subr.mxu0 0.0
    %1162 = vmatpush1.xpose.msra.mxu0 0.0
    %1163 = vmatprep.subr.mxu0 0.0
    %1164 = vmatpush1.xpose.msra.mxu0 0.0
    %1165 = vmatprep.subr.mxu0 0.0
    %1166 = vmatpush1.xpose.msra.mxu0 0.0
    %1167 = vmatprep.subr.mxu0 0.0
    %1168 = vmatpush1.xpose.msra.mxu0 0.0
    %1169 = vmatprep.subr.mxu0 0.0
    %1170 = vmatpush1.xpose.msra.mxu0 0.0
    %1171 = vmatprep.subr.mxu0 0.0
    %1172 = vmatpush1.xpose.msra.mxu0 0.0
    %1173 = vmatprep.subr.mxu0 0.0
    %1174 = vmatpush1.xpose.msra.mxu0 0.0
    %1175 = vmatprep.subr.mxu0 0.0
    %1176 = vmatpush1.xpose.msra.mxu0 0.0
    %1177 = vmatprep.mubr.f32.mxu0 0.0
    %1178 = vmatmul.mubr.f32.gmra.mrb[0].mxu0 %v1109
    %v1179 = vpop.f32.mrb[0].mxu0
    %v1180 = vadd.f32 0.0, %v1179
    %v1181 = vpop.f32.mrb[0].mxu0
    %1182 = vdwg.mxu0
    %1183 = vrot.lane.b32.xlu0 %v411, 112
    %v1184 = vpop.permute.xlu0 %1183
    %1186 = vrot.lane.b32.xlu0 %v1101, 112
    %v1187 = vpop.permute.xlu0 %1186
    %v1188 = vsel %vm420, %v1184, 0
    %v1190 = vsel %vm420, %v1187, 0
    %1192 = vmatprep.subr.mxu0 0.0
    %1193 = vmatpush1.xpose.msra.mxu0 %v1190
    %1194 = vmatprep.subr.mxu0 0.0
    %1195 = vmatpush1.xpose.msra.mxu0 0.0
    %1196 = vmatprep.subr.mxu0 0.0
    %1197 = vmatpush1.xpose.msra.mxu0 0.0
    %1198 = vmatprep.subr.mxu0 0.0
    %1199 = vmatpush1.xpose.msra.mxu0 0.0
    %1200 = vmatprep.subr.mxu0 0.0
    %1201 = vmatpush1.xpose.msra.mxu0 0.0
    %1202 = vmatprep.subr.mxu0 0.0
    %1203 = vmatpush1.xpose.msra.mxu0 0.0
    %1204 = vmatprep.subr.mxu0 0.0
    %1205 = vmatpush1.xpose.msra.mxu0 0.0
    %1206 = vmatprep.subr.mxu0 0.0
    %1207 = vmatpush1.xpose.msra.mxu0 0.0
    %1208 = vmatprep.subr.mxu0 0.0
    %1209 = vmatpush1.xpose.msra.mxu0 0.0
    %1210 = vmatprep.subr.mxu0 0.0
    %1211 = vmatpush1.xpose.msra.mxu0 0.0
    %1212 = vmatprep.subr.mxu0 0.0
    %1213 = vmatpush1.xpose.msra.mxu0 0.0
    %1214 = vmatprep.subr.mxu0 0.0
    %1215 = vmatpush1.xpose.msra.mxu0 0.0
    %1216 = vmatprep.subr.mxu0 0.0
    %1217 = vmatpush1.xpose.msra.mxu0 0.0
    %1218 = vmatprep.subr.mxu0 0.0
    %1219 = vmatpush1.xpose.msra.mxu0 0.0
    %1220 = vmatprep.subr.mxu0 0.0
    %1221 = vmatpush1.xpose.msra.mxu0 0.0
    %1222 = vmatprep.subr.mxu0 0.0
    %1223 = vmatpush1.xpose.msra.mxu0 0.0
    %1224 = vmatprep.subr.mxu0 0.0
    %1225 = vmatpush1.xpose.msra.mxu0 0.0
    %1226 = vmatprep.subr.mxu0 0.0
    %1227 = vmatpush1.xpose.msra.mxu0 0.0
    %1228 = vmatprep.subr.mxu0 0.0
    %1229 = vmatpush1.xpose.msra.mxu0 0.0
    %1230 = vmatprep.subr.mxu0 0.0
    %1231 = vmatpush1.xpose.msra.mxu0 0.0
    %1232 = vmatprep.subr.mxu0 0.0
    %1233 = vmatpush1.xpose.msra.mxu0 0.0
    %1234 = vmatprep.subr.mxu0 0.0
    %1235 = vmatpush1.xpose.msra.mxu0 0.0
    %1236 = vmatprep.subr.mxu0 0.0
    %1237 = vmatpush1.xpose.msra.mxu0 0.0
    %1238 = vmatprep.subr.mxu0 0.0
    %1239 = vmatpush1.xpose.msra.mxu0 0.0
    %1240 = vmatprep.subr.mxu0 0.0
    %1241 = vmatpush1.xpose.msra.mxu0 0.0
    %1242 = vmatprep.subr.mxu0 0.0
    %1243 = vmatpush1.xpose.msra.mxu0 0.0
    %1244 = vmatprep.subr.mxu0 0.0
    %1245 = vmatpush1.xpose.msra.mxu0 0.0
    %1246 = vmatprep.subr.mxu0 0.0
    %1247 = vmatpush1.xpose.msra.mxu0 0.0
    %1248 = vmatprep.subr.mxu0 0.0
    %1249 = vmatpush1.xpose.msra.mxu0 0.0
    %1250 = vmatprep.subr.mxu0 0.0
    %1251 = vmatpush1.xpose.msra.mxu0 0.0
    %1252 = vmatprep.subr.mxu0 0.0
    %1253 = vmatpush1.xpose.msra.mxu0 0.0
    %1254 = vmatprep.subr.mxu0 0.0
    %1255 = vmatpush1.xpose.msra.mxu0 0.0
    %1256 = vmatprep.mubr.f32.mxu0 0.0
    %1257 = vmatmul.mubr.f32.gmra.mrb[0].mxu0 %v1188
    %v1258 = vpop.f32.mrb[0].mxu0
    %v1259 = vadd.f32 0.0, %v1258
    %v1260 = vpop.f32.mrb[0].mxu0
    %1261 = vdwg.mxu0
    %v1262 = vmul.f32 %v1180, 0.35355338
    %v1263 = vmul.f32 %v1259, 0.35355338
    %v1264 = vadd.f32 %v1262, %v415
    %v1265 = vadd.f32 %v1263, %v415
    %v1266 = vsel %vm420, %v1264, -inf
    %1267 = vmax.xlane.f32.xlu0 %v1266
    %v1268 = vpop.xlane.xlu0 %1267
    %v1269 = vsel %vm420, %v1265, -inf
    %1270 = vmax.xlane.f32.xlu0 %v1269
    %v1271 = vpop.xlane.xlu0 %1270
    %v1272 = vsub.f32 %v1264, %v1268
    %v1273 = vsub.f32 %v1265, %v1271
    %v1274 = vmul.f32 %v1272, 1.442695
    %v1275 = vpow.pop %v1274
    %v1276 = vmul.f32 %v1273, 1.442695
    %v1277 = vpow.pop %v1276
    %v1278 = vsel %vm420, %v1275, 0.0
    %1279 = vadd.xlane.f32.xlu0 %v1278
    %v1280 = vpop.xlane.xlu0 %1279
    %v1281 = vsel %vm420, %v1277, 0.0
    %1282 = vadd.xlane.f32.xlu0 %v1281
    %v1283 = vpop.xlane.xlu0 %1282
    %v1284 = vrcp.pop %v1280
    %v1285 = vrcp.pop %v1283
    %1287 = vrot.lane.b32.xlu0 %v1102, 112
    %v1288 = vpop.permute.xlu0 %1287
    %v1291 = vsel %vm420, %v1275, 0
    %1293 = vmatprep.subr.mxu0 0.0
    %1294 = vmatpush1.msra.mxu0 %v1288
    %1295 = vmatprep.subr.mxu0 0.0
    %1296 = vmatpush1.msra.mxu0 0.0
    %1297 = vmatprep.subr.mxu0 0.0
    %1298 = vmatpush1.msra.mxu0 0.0
    %1299 = vmatprep.subr.mxu0 0.0
    %1300 = vmatpush1.msra.mxu0 0.0
    %1301 = vmatprep.subr.mxu0 0.0
    %1302 = vmatpush1.msra.mxu0 0.0
    %1303 = vmatprep.subr.mxu0 0.0
    %1304 = vmatpush1.msra.mxu0 0.0
    %1305 = vmatprep.subr.mxu0 0.0
    %1306 = vmatpush1.msra.mxu0 0.0
    %1307 = vmatprep.subr.mxu0 0.0
    %1308 = vmatpush1.msra.mxu0 0.0
    %1309 = vmatprep.subr.mxu0 0.0
    %1310 = vmatpush1.msra.mxu0 0.0
    %1311 = vmatprep.subr.mxu0 0.0
    %1312 = vmatpush1.msra.mxu0 0.0
    %1313 = vmatprep.subr.mxu0 0.0
    %1314 = vmatpush1.msra.mxu0 0.0
    %1315 = vmatprep.subr.mxu0 0.0
    %1316 = vmatpush1.msra.mxu0 0.0
    %1317 = vmatprep.subr.mxu0 0.0
    %1318 = vmatpush1.msra.mxu0 0.0
    %1319 = vmatprep.subr.mxu0 0.0
    %1320 = vmatpush1.msra.mxu0 0.0
    %1321 = vmatprep.subr.mxu0 0.0
    %1322 = vmatpush1.msra.mxu0 0.0
    %1323 = vmatprep.subr.mxu0 0.0
    %1324 = vmatpush1.msra.mxu0 0.0
    %1325 = vmatprep.subr.mxu0 0.0
    %1326 = vmatpush1.msra.mxu0 0.0
    %1327 = vmatprep.subr.mxu0 0.0
    %1328 = vmatpush1.msra.mxu0 0.0
    %1329 = vmatprep.subr.mxu0 0.0
    %1330 = vmatpush1.msra.mxu0 0.0
    %1331 = vmatprep.subr.mxu0 0.0
    %1332 = vmatpush1.msra.mxu0 0.0
    %1333 = vmatprep.subr.mxu0 0.0
    %1334 = vmatpush1.msra.mxu0 0.0
    %1335 = vmatprep.subr.mxu0 0.0
    %1336 = vmatpush1.msra.mxu0 0.0
    %1337 = vmatprep.subr.mxu0 0.0
    %1338 = vmatpush1.msra.mxu0 0.0
    %1339 = vmatprep.subr.mxu0 0.0
    %1340 = vmatpush1.msra.mxu0 0.0
    %1341 = vmatprep.subr.mxu0 0.0
    %1342 = vmatpush1.msra.mxu0 0.0
    %1343 = vmatprep.subr.mxu0 0.0
    %1344 = vmatpush1.msra.mxu0 0.0
    %1345 = vmatprep.subr.mxu0 0.0
    %1346 = vmatpush1.msra.mxu0 0.0
    %1347 = vmatprep.subr.mxu0 0.0
    %1348 = vmatpush1.msra.mxu0 0.0
    %1349 = vmatprep.subr.mxu0 0.0
    %1350 = vmatpush1.msra.mxu0 0.0
    %1351 = vmatprep.subr.mxu0 0.0
    %1352 = vmatpush1.msra.mxu0 0.0
    %1353 = vmatprep.subr.mxu0 0.0
    %1354 = vmatpush1.msra.mxu0 0.0
    %1355 = vmatprep.subr.mxu0 0.0
    %1356 = vmatpush1.msra.mxu0 0.0
    %1357 = vmatprep.mubr.f32.mxu0 0.0
    %1358 = vmatmul.mubr.f32.gmra.mrb[0].mxu0 %v1291
    %v1359 = vpop.f32.mrb[0].mxu0
    %v1360 = vadd.f32 0.0, %v1359
    %v1361 = vpop.f32.mrb[0].mxu0
    %1362 = vdwg.mxu0
    %1364 = vrot.lane.b32.xlu0 %v1103, 112
    %v1365 = vpop.permute.xlu0 %1364
    %v1368 = vsel %vm420, %v1277, 0
    %1370 = vmatprep.subr.mxu0 0.0
    %1371 = vmatpush1.msra.mxu0 %v1365
    %1372 = vmatprep.subr.mxu0 0.0
    %1373 = vmatpush1.msra.mxu0 0.0
    %1374 = vmatprep.subr.mxu0 0.0
    %1375 = vmatpush1.msra.mxu0 0.0
    %1376 = vmatprep.subr.mxu0 0.0
    %1377 = vmatpush1.msra.mxu0 0.0
    %1378 = vmatprep.subr.mxu0 0.0
    %1379 = vmatpush1.msra.mxu0 0.0
    %1380 = vmatprep.subr.mxu0 0.0
    %1381 = vmatpush1.msra.mxu0 0.0
    %1382 = vmatprep.subr.mxu0 0.0
    %1383 = vmatpush1.msra.mxu0 0.0
    %1384 = vmatprep.subr.mxu0 0.0
    %1385 = vmatpush1.msra.mxu0 0.0
    %1386 = vmatprep.subr.mxu0 0.0
    %1387 = vmatpush1.msra.mxu0 0.0
    %1388 = vmatprep.subr.mxu0 0.0
    %1389 = vmatpush1.msra.mxu0 0.0
    %1390 = vmatprep.subr.mxu0 0.0
    %1391 = vmatpush1.msra.mxu0 0.0
    %1392 = vmatprep.subr.mxu0 0.0
    %1393 = vmatpush1.msra.mxu0 0.0
    %1394 = vmatprep.subr.mxu0 0.0
    %1395 = vmatpush1.msra.mxu0 0.0
    %1396 = vmatprep.subr.mxu0 0.0
    %1397 = vmatpush1.msra.mxu0 0.0
    %1398 = vmatprep.subr.mxu0 0.0
    %1399 = vmatpush1.msra.mxu0 0.0
    %1400 = vmatprep.subr.mxu0 0.0
    %1401 = vmatpush1.msra.mxu0 0.0
    %1402 = vmatprep.subr.mxu0 0.0
    %1403 = vmatpush1.msra.mxu0 0.0
    %1404 = vmatprep.subr.mxu0 0.0
    %1405 = vmatpush1.msra.mxu0 0.0
    %1406 = vmatprep.subr.mxu0 0.0
    %1407 = vmatpush1.msra.mxu0 0.0
    %1408 = vmatprep.subr.mxu0 0.0
    %1409 = vmatpush1.msra.mxu0 0.0
    %1410 = vmatprep.subr.mxu0 0.0
    %1411 = vmatpush1.msra.mxu0 0.0
    %1412 = vmatprep.subr.mxu0 0.0
    %1413 = vmatpush1.msra.mxu0 0.0
    %1414 = vmatprep.subr.mxu0 0.0
    %1415 = vmatpush1.msra.mxu0 0.0
    %1416 = vmatprep.subr.mxu0 0.0
    %1417 = vmatpush1.msra.mxu0 0.0
    %1418 = vmatprep.subr.mxu0 0.0
    %1419 = vmatpush1.msra.mxu0 0.0
    %1420 = vmatprep.subr.mxu0 0.0
    %1421 = vmatpush1.msra.mxu0 0.0
    %1422 = vmatprep.subr.mxu0 0.0
    %1423 = vmatpush1.msra.mxu0 0.0
    %1424 = vmatprep.subr.mxu0 0.0
    %1425 = vmatpush1.msra.mxu0 0.0
    %1426 = vmatprep.subr.mxu0 0.0
    %1427 = vmatpush1.msra.mxu0 0.0
    %1428 = vmatprep.subr.mxu0 0.0
    %1429 = vmatpush1.msra.mxu0 0.0
    %1430 = vmatprep.subr.mxu0 0.0
    %1431 = vmatpush1.msra.mxu0 0.0
    %1432 = vmatprep.subr.mxu0 0.0
    %1433 = vmatpush1.msra.mxu0 0.0
    %1434 = vmatprep.mubr.f32.mxu0 0.0
    %1435 = vmatmul.mubr.f32.gmra.mrb[0].mxu0 %v1368
    %v1436 = vpop.f32.mrb[0].mxu0
    %v1437 = vadd.f32 0.0, %v1436
    %v1438 = vpop.f32.mrb[0].mxu0
    %1439 = vdwg.mxu0
    %v1440 = vmul.f32 %v1360, %v1284
    %v1441 = vmul.f32 %v1437, %v1285
    %1444 = vrot.lane.b32.xlu0 %v1440, 16
    %v1445 = vpop.permute.xlu0 %1444
    %1446 = vrot.lane.b32.xlu0 %v1441, 16
    %v1447 = vpop.permute.xlu0 %1446
    %vm1450 = vcmask 195712
    %1451 = vst.msk [vmem:[#allocation4] sm:$0xff] %vm1450, %v1445
    %1452 = vst.msk [vmem:[#allocation4 + $0x8] sm:$0xff] %vm1450, %v1447
    %v1453 = vld [vmem:[#allocation2] sm:$0xff]
    %v1454 = vld [vmem:[#allocation2 + $0x8] sm:$0xff]
    %v1455 = vld [vmem:[#allocation3] sm:$0xff]
    %v1456 = vld [vmem:[#allocation3 + $0x8] sm:$0xff]
    %1457 = vrot.lane.b32.xlu0 %v406, 104
    %v1458 = vpop.permute.xlu0 %1457
    %1460 = vrot.lane.b32.xlu0 %v1453, 104
    %v1461 = vpop.permute.xlu0 %1460
    %v1462 = vsel %vm420, %v1458, 0
    %v1464 = vsel %vm420, %v1461, 0
    %1466 = vmatprep.subr.mxu0 0.0
    %1467 = vmatpush1.xpose.msra.mxu0 %v1464
    %1468 = vmatprep.subr.mxu0 0.0
    %1469 = vmatpush1.xpose.msra.mxu0 0.0
    %1470 = vmatprep.subr.mxu0 0.0
    %1471 = vmatpush1.xpose.msra.mxu0 0.0
    %1472 = vmatprep.subr.mxu0 0.0
    %1473 = vmatpush1.xpose.msra.mxu0 0.0
    %1474 = vmatprep.subr.mxu0 0.0
    %1475 = vmatpush1.xpose.msra.mxu0 0.0
    %1476 = vmatprep.subr.mxu0 0.0
    %1477 = vmatpush1.xpose.msra.mxu0 0.0
    %1478 = vmatprep.subr.mxu0 0.0
    %1479 = vmatpush1.xpose.msra.mxu0 0.0
    %1480 = vmatprep.subr.mxu0 0.0
    %1481 = vmatpush1.xpose.msra.mxu0 0.0
    %1482 = vmatprep.subr.mxu0 0.0
    %1483 = vmatpush1.xpose.msra.mxu0 0.0
    %1484 = vmatprep.subr.mxu0 0.0
    %1485 = vmatpush1.xpose.msra.mxu0 0.0
    %1486 = vmatprep.subr.mxu0 0.0
    %1487 = vmatpush1.xpose.msra.mxu0 0.0
    %1488 = vmatprep.subr.mxu0 0.0
    %1489 = vmatpush1.xpose.msra.mxu0 0.0
    %1490 = vmatprep.subr.mxu0 0.0
    %1491 = vmatpush1.xpose.msra.mxu0 0.0
    %1492 = vmatprep.subr.mxu0 0.0
    %1493 = vmatpush1.xpose.msra.mxu0 0.0
    %1494 = vmatprep.subr.mxu0 0.0
    %1495 = vmatpush1.xpose.msra.mxu0 0.0
    %1496 = vmatprep.subr.mxu0 0.0
    %1497 = vmatpush1.xpose.msra.mxu0 0.0
    %1498 = vmatprep.subr.mxu0 0.0
    %1499 = vmatpush1.xpose.msra.mxu0 0.0
    %1500 = vmatprep.subr.mxu0 0.0
    %1501 = vmatpush1.xpose.msra.mxu0 0.0
    %1502 = vmatprep.subr.mxu0 0.0
    %1503 = vmatpush1.xpose.msra.mxu0 0.0
    %1504 = vmatprep.subr.mxu0 0.0
    %1505 = vmatpush1.xpose.msra.mxu0 0.0
    %1506 = vmatprep.subr.mxu0 0.0
    %1507 = vmatpush1.xpose.msra.mxu0 0.0
    %1508 = vmatprep.subr.mxu0 0.0
    %1509 = vmatpush1.xpose.msra.mxu0 0.0
    %1510 = vmatprep.subr.mxu0 0.0
    %1511 = vmatpush1.xpose.msra.mxu0 0.0
    %1512 = vmatprep.subr.mxu0 0.0
    %1513 = vmatpush1.xpose.msra.mxu0 0.0
    %1514 = vmatprep.subr.mxu0 0.0
    %1515 = vmatpush1.xpose.msra.mxu0 0.0
    %1516 = vmatprep.subr.mxu0 0.0
    %1517 = vmatpush1.xpose.msra.mxu0 0.0
    %1518 = vmatprep.subr.mxu0 0.0
    %1519 = vmatpush1.xpose.msra.mxu0 0.0
    %1520 = vmatprep.subr.mxu0 0.0
    %1521 = vmatpush1.xpose.msra.mxu0 0.0
    %1522 = vmatprep.subr.mxu0 0.0
    %1523 = vmatpush1.xpose.msra.mxu0 0.0
    %1524 = vmatprep.subr.mxu0 0.0
    %1525 = vmatpush1.xpose.msra.mxu0 0.0
    %1526 = vmatprep.subr.mxu0 0.0
    %1527 = vmatpush1.xpose.msra.mxu0 0.0
    %1528 = vmatprep.subr.mxu0 0.0
    %1529 = vmatpush1.xpose.msra.mxu0 0.0
    %1530 = vmatprep.mubr.f32.mxu0 0.0
    %1531 = vmatmul.mubr.f32.gmra.mrb[0].mxu0 %v1462
    %v1532 = vpop.f32.mrb[0].mxu0
    %v1533 = vadd.f32 0.0, %v1532
    %v1534 = vpop.f32.mrb[0].mxu0
    %1535 = vdwg.mxu0
    %1536 = vrot.lane.b32.xlu0 %v411, 104
    %v1537 = vpop.permute.xlu0 %1536
    %1539 = vrot.lane.b32.xlu0 %v1454, 104
    %v1540 = vpop.permute.xlu0 %1539
    %v1541 = vsel %vm420, %v1537, 0
    %v1543 = vsel %vm420, %v1540, 0
    %1545 = vmatprep.subr.mxu0 0.0
    %1546 = vmatpush1.xpose.msra.mxu0 %v1543
    %1547 = vmatprep.subr.mxu0 0.0
    %1548 = vmatpush1.xpose.msra.mxu0 0.0
    %1549 = vmatprep.subr.mxu0 0.0
    %1550 = vmatpush1.xpose.msra.mxu0 0.0
    %1551 = vmatprep.subr.mxu0 0.0
    %1552 = vmatpush1.xpose.msra.mxu0 0.0
    %1553 = vmatprep.subr.mxu0 0.0
    %1554 = vmatpush1.xpose.msra.mxu0 0.0
    %1555 = vmatprep.subr.mxu0 0.0
    %1556 = vmatpush1.xpose.msra.mxu0 0.0
    %1557 = vmatprep.subr.mxu0 0.0
    %1558 = vmatpush1.xpose.msra.mxu0 0.0
    %1559 = vmatprep.subr.mxu0 0.0
    %1560 = vmatpush1.xpose.msra.mxu0 0.0
    %1561 = vmatprep.subr.mxu0 0.0
    %1562 = vmatpush1.xpose.msra.mxu0 0.0
    %1563 = vmatprep.subr.mxu0 0.0
    %1564 = vmatpush1.xpose.msra.mxu0 0.0
    %1565 = vmatprep.subr.mxu0 0.0
    %1566 = vmatpush1.xpose.msra.mxu0 0.0
    %1567 = vmatprep.subr.mxu0 0.0
    %1568 = vmatpush1.xpose.msra.mxu0 0.0
    %1569 = vmatprep.subr.mxu0 0.0
    %1570 = vmatpush1.xpose.msra.mxu0 0.0
    %1571 = vmatprep.subr.mxu0 0.0
    %1572 = vmatpush1.xpose.msra.mxu0 0.0
    %1573 = vmatprep.subr.mxu0 0.0
    %1574 = vmatpush1.xpose.msra.mxu0 0.0
    %1575 = vmatprep.subr.mxu0 0.0
    %1576 = vmatpush1.xpose.msra.mxu0 0.0
    %1577 = vmatprep.subr.mxu0 0.0
    %1578 = vmatpush1.xpose.msra.mxu0 0.0
    %1579 = vmatprep.subr.mxu0 0.0
    %1580 = vmatpush1.xpose.msra.mxu0 0.0
    %1581 = vmatprep.subr.mxu0 0.0
    %1582 = vmatpush1.xpose.msra.mxu0 0.0
    %1583 = vmatprep.subr.mxu0 0.0
    %1584 = vmatpush1.xpose.msra.mxu0 0.0
    %1585 = vmatprep.subr.mxu0 0.0
    %1586 = vmatpush1.xpose.msra.mxu0 0.0
    %1587 = vmatprep.subr.mxu0 0.0
    %1588 = vmatpush1.xpose.msra.mxu0 0.0
    %1589 = vmatprep.subr.mxu0 0.0
    %1590 = vmatpush1.xpose.msra.mxu0 0.0
    %1591 = vmatprep.subr.mxu0 0.0
    %1592 = vmatpush1.xpose.msra.mxu0 0.0
    %1593 = vmatprep.subr.mxu0 0.0
    %1594 = vmatpush1.xpose.msra.mxu0 0.0
    %1595 = vmatprep.subr.mxu0 0.0
    %1596 = vmatpush1.xpose.msra.mxu0 0.0
    %1597 = vmatprep.subr.mxu0 0.0
    %1598 = vmatpush1.xpose.msra.mxu0 0.0
    %1599 = vmatprep.subr.mxu0 0.0
    %1600 = vmatpush1.xpose.msra.mxu0 0.0
    %1601 = vmatprep.subr.mxu0 0.0
    %1602 = vmatpush1.xpose.msra.mxu0 0.0
    %1603 = vmatprep.subr.mxu0 0.0
    %1604 = vmatpush1.xpose.msra.mxu0 0.0
    %1605 = vmatprep.subr.mxu0 0.0
    %1606 = vmatpush1.xpose.msra.mxu0 0.0
    %1607 = vmatprep.subr.mxu0 0.0
    %1608 = vmatpush1.xpose.msra.mxu0 0.0
    %1609 = vmatprep.mubr.f32.mxu0 0.0
    %1610 = vmatmul.mubr.f32.gmra.mrb[0].mxu0 %v1541
    %v1611 = vpop.f32.mrb[0].mxu0
    %v1612 = vadd.f32 0.0, %v1611
    %v1613 = vpop.f32.mrb[0].mxu0
    %1614 = vdwg.mxu0
    %v1615 = vmul.f32 %v1533, 0.35355338
    %v1616 = vmul.f32 %v1612, 0.35355338
    %v1617 = vadd.f32 %v1615, %v415
    %v1618 = vadd.f32 %v1616, %v415
    %v1619 = vsel %vm420, %v1617, -inf
    %1620 = vmax.xlane.f32.xlu0 %v1619
    %v1621 = vpop.xlane.xlu0 %1620
    %v1622 = vsel %vm420, %v1618, -inf
    %1623 = vmax.xlane.f32.xlu0 %v1622
    %v1624 = vpop.xlane.xlu0 %1623
    %v1625 = vsub.f32 %v1617, %v1621
    %v1626 = vsub.f32 %v1618, %v1624
    %v1627 = vmul.f32 %v1625, 1.442695
    %v1628 = vpow.pop %v1627
    %v1629 = vmul.f32 %v1626, 1.442695
    %v1630 = vpow.pop %v1629
    %v1631 = vsel %vm420, %v1628, 0.0
    %1632 = vadd.xlane.f32.xlu0 %v1631
    %v1633 = vpop.xlane.xlu0 %1632
    %v1634 = vsel %vm420, %v1630, 0.0
    %1635 = vadd.xlane.f32.xlu0 %v1634
    %v1636 = vpop.xlane.xlu0 %1635
    %v1637 = vrcp.pop %v1633
    %v1638 = vrcp.pop %v1636
    %1640 = vrot.lane.b32.xlu0 %v1455, 104
    %v1641 = vpop.permute.xlu0 %1640
    %v1644 = vsel %vm420, %v1628, 0
    %1646 = vmatprep.subr.mxu0 0.0
    %1647 = vmatpush1.msra.mxu0 %v1641
    %1648 = vmatprep.subr.mxu0 0.0
    %1649 = vmatpush1.msra.mxu0 0.0
    %1650 = vmatprep.subr.mxu0 0.0
    %1651 = vmatpush1.msra.mxu0 0.0
    %1652 = vmatprep.subr.mxu0 0.0
    %1653 = vmatpush1.msra.mxu0 0.0
    %1654 = vmatprep.subr.mxu0 0.0
    %1655 = vmatpush1.msra.mxu0 0.0
    %1656 = vmatprep.subr.mxu0 0.0
    %1657 = vmatpush1.msra.mxu0 0.0
    %1658 = vmatprep.subr.mxu0 0.0
    %1659 = vmatpush1.msra.mxu0 0.0
    %1660 = vmatprep.subr.mxu0 0.0
    %1661 = vmatpush1.msra.mxu0 0.0
    %1662 = vmatprep.subr.mxu0 0.0
    %1663 = vmatpush1.msra.mxu0 0.0
    %1664 = vmatprep.subr.mxu0 0.0
    %1665 = vmatpush1.msra.mxu0 0.0
    %1666 = vmatprep.subr.mxu0 0.0
    %1667 = vmatpush1.msra.mxu0 0.0
    %1668 = vmatprep.subr.mxu0 0.0
    %1669 = vmatpush1.msra.mxu0 0.0
    %1670 = vmatprep.subr.mxu0 0.0
    %1671 = vmatpush1.msra.mxu0 0.0
    %1672 = vmatprep.subr.mxu0 0.0
    %1673 = vmatpush1.msra.mxu0 0.0
    %1674 = vmatprep.subr.mxu0 0.0
    %1675 = vmatpush1.msra.mxu0 0.0
    %1676 = vmatprep.subr.mxu0 0.0
    %1677 = vmatpush1.msra.mxu0 0.0
    %1678 = vmatprep.subr.mxu0 0.0
    %1679 = vmatpush1.msra.mxu0 0.0
    %1680 = vmatprep.subr.mxu0 0.0
    %1681 = vmatpush1.msra.mxu0 0.0
    %1682 = vmatprep.subr.mxu0 0.0
    %1683 = vmatpush1.msra.mxu0 0.0
    %1684 = vmatprep.subr.mxu0 0.0
    %1685 = vmatpush1.msra.mxu0 0.0
    %1686 = vmatprep.subr.mxu0 0.0
    %1687 = vmatpush1.msra.mxu0 0.0
    %1688 = vmatprep.subr.mxu0 0.0
    %1689 = vmatpush1.msra.mxu0 0.0
    %1690 = vmatprep.subr.mxu0 0.0
    %1691 = vmatpush1.msra.mxu0 0.0
    %1692 = vmatprep.subr.mxu0 0.0
    %1693 = vmatpush1.msra.mxu0 0.0
    %1694 = vmatprep.subr.mxu0 0.0
    %1695 = vmatpush1.msra.mxu0 0.0
    %1696 = vmatprep.subr.mxu0 0.0
    %1697 = vmatpush1.msra.mxu0 0.0
    %1698 = vmatprep.subr.mxu0 0.0
    %1699 = vmatpush1.msra.mxu0 0.0
    %1700 = vmatprep.subr.mxu0 0.0
    %1701 = vmatpush1.msra.mxu0 0.0
    %1702 = vmatprep.subr.mxu0 0.0
    %1703 = vmatpush1.msra.mxu0 0.0
    %1704 = vmatprep.subr.mxu0 0.0
    %1705 = vmatpush1.msra.mxu0 0.0
    %1706 = vmatprep.subr.mxu0 0.0
    %1707 = vmatpush1.msra.mxu0 0.0
    %1708 = vmatprep.subr.mxu0 0.0
    %1709 = vmatpush1.msra.mxu0 0.0
    %1710 = vmatprep.mubr.f32.mxu0 0.0
    %1711 = vmatmul.mubr.f32.gmra.mrb[0].mxu0 %v1644
    %v1712 = vpop.f32.mrb[0].mxu0
    %v1713 = vadd.f32 0.0, %v1712
    %v1714 = vpop.f32.mrb[0].mxu0
    %1715 = vdwg.mxu0
    %1717 = vrot.lane.b32.xlu0 %v1456, 104
    %v1718 = vpop.permute.xlu0 %1717
    %v1721 = vsel %vm420, %v1630, 0
    %1723 = vmatprep.subr.mxu0 0.0
    %1724 = vmatpush1.msra.mxu0 %v1718
    %1725 = vmatprep.subr.mxu0 0.0
    %1726 = vmatpush1.msra.mxu0 0.0
    %1727 = vmatprep.subr.mxu0 0.0
    %1728 = vmatpush1.msra.mxu0 0.0
    %1729 = vmatprep.subr.mxu0 0.0
    %1730 = vmatpush1.msra.mxu0 0.0
    %1731 = vmatprep.subr.mxu0 0.0
    %1732 = vmatpush1.msra.mxu0 0.0
    %1733 = vmatprep.subr.mxu0 0.0
    %1734 = vmatpush1.msra.mxu0 0.0
    %1735 = vmatprep.subr.mxu0 0.0
    %1736 = vmatpush1.msra.mxu0 0.0
    %1737 = vmatprep.subr.mxu0 0.0
    %1738 = vmatpush1.msra.mxu0 0.0
    %1739 = vmatprep.subr.mxu0 0.0
    %1740 = vmatpush1.msra.mxu0 0.0
    %1741 = vmatprep.subr.mxu0 0.0
    %1742 = vmatpush1.msra.mxu0 0.0
    %1743 = vmatprep.subr.mxu0 0.0
    %1744 = vmatpush1.msra.mxu0 0.0
    %1745 = vmatprep.subr.mxu0 0.0
    %1746 = vmatpush1.msra.mxu0 0.0
    %1747 = vmatprep.subr.mxu0 0.0
    %1748 = vmatpush1.msra.mxu0 0.0
    %1749 = vmatprep.subr.mxu0 0.0
    %1750 = vmatpush1.msra.mxu0 0.0
    %1751 = vmatprep.subr.mxu0 0.0
    %1752 = vmatpush1.msra.mxu0 0.0
    %1753 = vmatprep.subr.mxu0 0.0
    %1754 = vmatpush1.msra.mxu0 0.0
    %1755 = vmatprep.subr.mxu0 0.0
    %1756 = vmatpush1.msra.mxu0 0.0
    %1757 = vmatprep.subr.mxu0 0.0
    %1758 = vmatpush1.msra.mxu0 0.0
    %1759 = vmatprep.subr.mxu0 0.0
    %1760 = vmatpush1.msra.mxu0 0.0
    %1761 = vmatprep.subr.mxu0 0.0
    %1762 = vmatpush1.msra.mxu0 0.0
    %1763 = vmatprep.subr.mxu0 0.0
    %1764 = vmatpush1.msra.mxu0 0.0
    %1765 = vmatprep.subr.mxu0 0.0
    %1766 = vmatpush1.msra.mxu0 0.0
    %1767 = vmatprep.subr.mxu0 0.0
    %1768 = vmatpush1.msra.mxu0 0.0
    %1769 = vmatprep.subr.mxu0 0.0
    %1770 = vmatpush1.msra.mxu0 0.0
    %1771 = vmatprep.subr.mxu0 0.0
    %1772 = vmatpush1.msra.mxu0 0.0
    %1773 = vmatprep.subr.mxu0 0.0
    %1774 = vmatpush1.msra.mxu0 0.0
    %1775 = vmatprep.subr.mxu0 0.0
    %1776 = vmatpush1.msra.mxu0 0.0
    %1777 = vmatprep.subr.mxu0 0.0
    %1778 = vmatpush1.msra.mxu0 0.0
    %1779 = vmatprep.subr.mxu0 0.0
    %1780 = vmatpush1.msra.mxu0 0.0
    %1781 = vmatprep.subr.mxu0 0.0
    %1782 = vmatpush1.msra.mxu0 0.0
    %1783 = vmatprep.subr.mxu0 0.0
    %1784 = vmatpush1.msra.mxu0 0.0
    %1785 = vmatprep.subr.mxu0 0.0
    %1786 = vmatpush1.msra.mxu0 0.0
    %1787 = vmatprep.mubr.f32.mxu0 0.0
    %1788 = vmatmul.mubr.f32.gmra.mrb[0].mxu0 %v1721
    %v1789 = vpop.f32.mrb[0].mxu0
    %v1790 = vadd.f32 0.0, %v1789
    %v1791 = vpop.f32.mrb[0].mxu0
    %1792 = vdwg.mxu0
    %v1793 = vmul.f32 %v1713, %v1637
    %v1794 = vmul.f32 %v1790, %v1638
    %1797 = vrot.lane.b32.xlu0 %v1793, 24
    %v1798 = vpop.permute.xlu0 %1797
    %1799 = vrot.lane.b32.xlu0 %v1794, 24
    %v1800 = vpop.permute.xlu0 %1799
    %vm1803 = vcmask 261312
    %1804 = vst.msk [vmem:[#allocation4] sm:$0xff] %vm1803, %v1798
    %1805 = vst.msk [vmem:[#allocation4 + $0x8] sm:$0xff] %vm1803, %v1800
    %v1806 = vld [vmem:[#allocation4] sm:$0xff]
    %v1807 = vld [vmem:[#allocation4 + $0x8] sm:$0xff]
    %v1808 = vld [vmem:[%s9] sm:$0xff]
    %v1809 = vld [vmem:[%s9 + $0x8] sm:$0xff]
    %v1810 = vld [vmem:[%s9 + $0x10] sm:$0xff]
    %v1811 = vld [vmem:[%s9 + $0x18] sm:$0xff]
    %v1812 = vld [vmem:[%s10] sm:$0x1]
    %v1814 = vlaneseq
    %v1815 = vshrl.u32 %v1814, 7
    %v1816 = vsub.s32 0, %v1815
    %v1817 = vrot.slane %v1812, %v1816
    %v1820 = vsel %vm332, %v1806, 0
    %v1823 = vsel %vm332, %v1807, 0
    %1825 = vmatprep.subr.mxu0 0.0
    %1826 = vmatpush1.msra.mxu0 %v1808
    %1827 = vmatprep.subr.mxu0 0.0
    %1828 = vmatpush1.msra.mxu0 %v1809
    %1829 = vmatprep.subr.mxu0 0.0
    %1830 = vmatpush1.msra.mxu0 %v1810
    %1831 = vmatprep.subr.mxu0 0.0
    %1832 = vmatpush1.msra.mxu0 %v1811
    %1833 = vmatprep.subr.mxu0 0.0
    %1834 = vmatpush1.msra.mxu0 0.0
    %1835 = vmatprep.subr.mxu0 0.0
    %1836 = vmatpush1.msra.mxu0 0.0
    %1837 = vmatprep.subr.mxu0 0.0
    %1838 = vmatpush1.msra.mxu0 0.0
    %1839 = vmatprep.subr.mxu0 0.0
    %1840 = vmatpush1.msra.mxu0 0.0
    %1841 = vmatprep.subr.mxu0 0.0
    %1842 = vmatpush1.msra.mxu0 0.0
    %1843 = vmatprep.subr.mxu0 0.0
    %1844 = vmatpush1.msra.mxu0 0.0
    %1845 = vmatprep.subr.mxu0 0.0
    %1846 = vmatpush1.msra.mxu0 0.0
    %1847 = vmatprep.subr.mxu0 0.0
    %1848 = vmatpush1.msra.mxu0 0.0
    %1849 = vmatprep.subr.mxu0 0.0
    %1850 = vmatpush1.msra.mxu0 0.0
    %1851 = vmatprep.subr.mxu0 0.0
    %1852 = vmatpush1.msra.mxu0 0.0
    %1853 = vmatprep.subr.mxu0 0.0
    %1854 = vmatpush1.msra.mxu0 0.0
    %1855 = vmatprep.subr.mxu0 0.0
    %1856 = vmatpush1.msra.mxu0 0.0
    %1857 = vmatprep.subr.mxu0 0.0
    %1858 = vmatpush1.msra.mxu0 0.0
    %1859 = vmatprep.subr.mxu0 0.0
    %1860 = vmatpush1.msra.mxu0 0.0
    %1861 = vmatprep.subr.mxu0 0.0
    %1862 = vmatpush1.msra.mxu0 0.0
    %1863 = vmatprep.subr.mxu0 0.0
    %1864 = vmatpush1.msra.mxu0 0.0
    %1865 = vmatprep.subr.mxu0 0.0
    %1866 = vmatpush1.msra.mxu0 0.0
    %1867 = vmatprep.subr.mxu0 0.0
    %1868 = vmatpush1.msra.mxu0 0.0
    %1869 = vmatprep.subr.mxu0 0.0
    %1870 = vmatpush1.msra.mxu0 0.0
    %1871 = vmatprep.subr.mxu0 0.0
    %1872 = vmatpush1.msra.mxu0 0.0
    %1873 = vmatprep.subr.mxu0 0.0
    %1874 = vmatpush1.msra.mxu0 0.0
    %1875 = vmatprep.subr.mxu0 0.0
    %1876 = vmatpush1.msra.mxu0 0.0
    %1877 = vmatprep.subr.mxu0 0.0
    %1878 = vmatpush1.msra.mxu0 0.0
    %1879 = vmatprep.subr.mxu0 0.0
    %1880 = vmatpush1.msra.mxu0 0.0
    %1881 = vmatprep.subr.mxu0 0.0
    %1882 = vmatpush1.msra.mxu0 0.0
    %1883 = vmatprep.subr.mxu0 0.0
    %1884 = vmatpush1.msra.mxu0 0.0
    %1885 = vmatprep.subr.mxu0 0.0
    %1886 = vmatpush1.msra.mxu0 0.0
    %1887 = vmatprep.subr.mxu0 0.0
    %1888 = vmatpush1.msra.mxu0 0.0
    %1889 = vmatprep.mubr.f32.mxu0 0.0
    %1890 = vmatmul.mubr.f32.gmra.mrb[0].mxu0 %v1820
    %v1891 = vpop.f32.mrb[0].mxu0
    %v1892 = vadd.f32 %v1817, %v1891
    %v1893 = vpop.f32.mrb[0].mxu0
    %1894 = vmatprep.mubr.f32.mxu0 0.0
    %1895 = vmatmul.mubr.f32.gmra.mrb[0].mxu0 %v1823
    %v1896 = vpop.f32.mrb[0].mxu0
    %v1897 = vadd.f32 %v1817, %v1896
    %v1898 = vpop.f32.mrb[0].mxu0
    %1899 = vdwg.mxu0
    %1900 = vst.msk [vmem:[#allocation17] sm:$0xff] %vm332, %v1892
    %1901 = vst.msk [vmem:[#allocation17 + $0x8] sm:$0xff] %vm332, %v1897
    // Predicated region
    $region78: #{tpu_custom_call.1} parent=1 // pred_check
      _
    $region79: #{tpu_custom_call.1} parent=1 // pred_check_branch
      %1903 = sbr.rel (0) target = $region81
    $region80: #{tpu_custom_call.1} parent=1 // pred_region
      %s1905 = ssub.s32 256, 256
      %1906 = vsyncadd [#allocation7], %s1905
      %s1907 = sshll.u32 [#allocation17], 4
      %s1908 = int_to_ptr.vmem [resolvable:$true] %s1907
      %1913 = dma.vmem_to_hbm [thread:$0]  %s1908, 256, %s11, [#allocation7], 128, 128, 8
    $region81: #{tpu_custom_call.1} parent=1 // pred_fallthru
      _
    // Predicated region
    $region82: #{tpu_custom_call.1} parent=1 // pred_check
      _
    $region83: #{tpu_custom_call.1} parent=1 // pred_check_branch
      %1915 = sbr.rel (0) target = $region85
    $region84: #{tpu_custom_call.1} parent=1 // pred_region
      %1916 = dma.done [#allocation7], 256
    $region85: #{tpu_custom_call.1} parent=1 // pred_fallthru
      _
    %1917 = vsyncpa [#allocation6], 1
    %1918 = vsyncpa [#allocation9], 1
    %1919 = vsyncpa [#allocation12], 1
    %1920 = vsyncpa [#allocation15], 1
    %1921 = vsyncpa [#allocation7], 1

</llo_original>
